<compile_context>
chip_gen: v7x
topology: tpu7x:2x2x1
jax: 0.10.0
libtpu: 0.0.40
codegen_flags: <defaults>
</compile_context>

<pallas_src>
import functools
from typing import Any, NamedTuple

import jax
import jax.numpy as jnp
import numpy as np
from jax.experimental import pallas as pl
from jax.experimental.pallas import tpu as pltpu

EPS = 1e-5


class _Cfg(NamedTuple):
    B: int
    Nf: int
    Nc: int
    Cin: int
    Cout: int
    bb: int              # batches folded into the lane dimension
    g: int               # batch groups stacked along the node (sublane) axis
    G: int               # grid steps = B / (bb * g)
    compute_dtype: Any   # MXU operand dtype (bf16 / f32); accumulation is f32


def _block4mag_kernel(p0_ref, p1_ref, p2_ref, a1_ref, a2_ref, s_ref, x_ref,
                      w120_ref, w121_ref, w122_ref, b12_ref,
                      w340_ref, w341_ref, w342_ref, b34_ref, o_ref):
    """One grid step = g row-stacked batch groups x bb lane-folded batches.

    Shapes (M = g*Nc rows, Lin = bb*Cin lanes, Lout = bb*Cout lanes):
      p0/p1/p2: (M, g*Nf)   = blockdiag_g(P), blockdiag_g(A@P), blockdiag_g(A^2@P)
      a1/a2:    (M, M)      = blockdiag_g(A), blockdiag_g(A^2)
      s:        (M, M) f32  = blockdiag_g(1/Nc)   (InstanceNorm averaging)
      x:        (1, g*Nf, Lin)
      w12*:     (Lin, Lout) = kron(I_bb, combined conv1/conv2 weights)
      w34*:     (Lout, Lout)
      b12/b34:  (M, Lout) f32 per-node collapsed biases
      o:        (1, M, Lout) f32
    """
    f32 = jnp.float32
    cdt = a1_ref.dtype
    x = x_ref[0]

    # CustomPoolingAdd + collapsed conv1/conv2.  u0/u1/u2 are independent
    # (AP, A^2P precomputed), keeping the serial MXU chain short.
    u0 = jnp.dot(p0_ref[...], x, preferred_element_type=f32).astype(cdt)
    u1 = jnp.dot(p1_ref[...], x, preferred_element_type=f32).astype(cdt)
    u2 = jnp.dot(p2_ref[...], x, preferred_element_type=f32).astype(cdt)
    h = (jnp.dot(u0, w120_ref[...], preferred_element_type=f32)
         + jnp.dot(u1, w121_ref[...], preferred_element_type=f32)
         + jnp.dot(u2, w122_ref[...], preferred_element_type=f32)
         + b12_ref[...])                                      # f32 bias add

    # InstanceNorm1d(out_channels), affine=False: normalize over the node axis
    # per (batch, channel) column.  Single pass, f32 statistics; the averaging
    # matmul S also broadcasts the stats back to every node row for free.
    S = s_ref[...]
    mean = jnp.dot(S, h, preferred_element_type=f32)
    ex2 = jnp.dot(S, h * h, preferred_element_type=f32)
    var = jnp.maximum(ex2 - mean * mean, 0.0)                 # clamp cancellation
    hn = (h - mean) * jax.lax.rsqrt(var + EPS)

    # Collapsed conv3/conv4.  A@hn and A^2@hn are independent matmuls.
    hc = hn.astype(cdt)
    g1 = jnp.dot(a1_ref[...], hc, preferred_element_type=f32).astype(cdt)
    g2 = jnp.dot(a2_ref[...], hc, preferred_element_type=f32).astype(cdt)
    out = (jnp.dot(hc, w340_ref[...], preferred_element_type=f32)
           + jnp.dot(g1, w341_ref[...], preferred_element_type=f32)
           + jnp.dot(g2, w342_ref[...], preferred_element_type=f32)
           + b34_ref[...])

    o_ref[0] = out.astype(o_ref.dtype)


def prepare_conv_block4_mag(P, A, params, *, batch,
                            compute_dtype=jnp.bfloat16,
                            batch_lanes=None, row_groups=None):
    """One-time preprocessing (hoisted out of the hot path).

    P: (Nc, Nf) densified pooling matrix (scatter-add of pool edge_attr).
    A: (Nc, Nc) densified weighted adjacency of the coarse point-point graph.
    Returns (cfg, mats) to pass to run_conv_block4_mag.
    """
    f32 = jnp.float32
    P = jnp.asarray(P, f32)
    A = jnp.asarray(A, f32)
    Nc, Nf = P.shape
    Cin, Cout = params["w1_root"].shape
    B = batch

    # ---- fusion factors ----------------------------------------------------
    if batch_lanes is None:
        divs = [d for d in range(1, B + 1) if B % d == 0 and d * Cout <= 256]
        aligned = [d for d in divs if (d * Cout) % 128 == 0]
        exact = [d for d in aligned if d * Cout == 128]
        bb = exact[0] if exact else (max(aligned) if aligned else max(divs))
    else:
        bb = batch_lanes
    assert B % bb == 0, "batch_lanes must divide the batch size"
    rem = B // bb
    if row_groups is None:
        g = 1
        # raise MXU rows toward 128-256 but keep >= 2 grid steps (v7x has two
        # TensorCores) whenever the batch allows it.
        while (rem % (2 * g) == 0 and rem // (2 * g) >= 2 and 2 * g * Nc <= 256):
            g *= 2
    else:
        g = row_groups
    assert rem % g == 0, "row_groups must divide batch/batch_lanes"
    G = rem // g

    # ---- graph matrices (precompute 2-hop forms; f32 then cast) ------------
    AP = A @ P
    A2 = A @ A
    A2P = A @ AP
    rowsum = jnp.sum(A, axis=1, keepdims=True)                 # (Nc, 1)

    def kron_i(n, M):
        return jnp.kron(jnp.eye(n, dtype=f32), M)

    # ---- collapse conv1/conv2 and conv3/conv4 (exact in f32) ---------------
    w1r, w1n, b1 = params["w1_root"], params["w1_nbr"], params["b1"]
    w2r, w2n, b2 = params["w2_root"], params["w2_nbr"], params["b2"]
    w3r, w3n, b3 = params["w3_root"], params["w3_nbr"], params["b3"]
    w4r, w4n, b4 = params["w4_root"], params["w4_nbr"], params["b4"]

    w12_0 = w1r @ w2r
    w12_1 = w1n @ w2r + w1r @ w2n
    w12_2 = w1n @ w2n
    bias12 = jnp.broadcast_to(b1 @ w2r + b2, (Nc, Cout)) + rowsum * (b1 @ w2n)

    w34_0 = w3r @ w4r
    w34_1 = w3n @ w4r + w3r @ w4n
    w34_2 = w3n @ w4n
    bias34 = jnp.broadcast_to(b3 @ w4r + b4, (Nc, Cout)) + rowsum * (b3 @ w4n)

    cdt = compute_dtype
    mats = (
        # grid-invariant graph matrices (block-diagonal over g row groups)
        kron_i(g, P).astype(cdt),
        kron_i(g, AP).astype(cdt),
        kron_i(g, A2P).astype(cdt),
        kron_i(g, A).astype(cdt),
        kron_i(g, A2).astype(cdt),
        kron_i(g, jnp.full((Nc, Nc), 1.0 / Nc, f32)).astype(f32),   # IN averaging
        # combined weights (block-diagonal over bb lane-folded batches)
        kron_i(bb, w12_0).astype(cdt),
        kron_i(bb, w12_1).astype(cdt),
        kron_i(bb, w12_2).astype(cdt),
        jnp.tile(bias12, (g, bb)).astype(f32),
        kron_i(bb, w34_0).astype(cdt),
        kron_i(bb, w34_1).astype(cdt),
        kron_i(bb, w34_2).astype(cdt),
        jnp.tile(bias34, (g, bb)).astype(f32),
    )
    cfg = _Cfg(B=B, Nf=Nf, Nc=Nc, Cin=Cin, Cout=Cout, bb=bb, g=g, G=G,
               compute_dtype=cdt)
    return cfg, mats


@functools.partial(jax.jit, static_argnames=("cfg",))
def run_conv_block4_mag(x, mats, cfg):
    """Hot path: x (B, Nf, Cin) f32 -> (B, Nc, Cout) f32."""
    B, Nf, Nc, Cin, Cout = cfg.B, cfg.Nf, cfg.Nc, cfg.Cin, cfg.Cout
    bb, g, G, cdt = cfg.bb, cfg.g, cfg.G, cfg.compute_dtype
    L_in, L_out = bb * Cin, bb * Cout
    M_in, M_out = g * Nf, g * Nc

    # Fold batches: b = step*(g*bb) + group*bb + lane_batch.
    # rows = (group, node), lanes = (lane_batch, channel).
    x2 = (x.reshape(G, g, bb, Nf, Cin).transpose(0, 1, 3, 2, 4)
            .reshape(G, M_in, L_in).astype(cdt))

    def const(a):
        # grid-invariant input: block = whole array, block index never changes
        return pl.BlockSpec(a.shape, lambda s: (0,) * a.ndim)

    in_specs = ([const(m) for m in mats[:6]]
                + [pl.BlockSpec((1, M_in, L_in), lambda s: (s, 0, 0))]
                + [const(m) for m in mats[6:]])
    out_spec = pl.BlockSpec((1, M_out, L_out), lambda s: (s, 0, 0))

    # Advisory cost estimate + explicit VMEM budget (per-step footprint is
    # small; keep the limit well under v7x's 64 MiB).
    flops = G * (3 * 2 * M_out * M_in * L_in
                 + 3 * 2 * M_out * L_in * L_out
                 + 2 * 2 * M_out * M_out * L_out        # A, A^2 matmuls
                 + 2 * 2 * M_out * M_out * L_out        # IN stat matmuls
                 + 3 * 2 * M_out * L_out * L_out)
    mat_bytes = sum(int(m.size) * m.dtype.itemsize for m in mats)
    per_step_bytes = (mat_bytes + M_in * L_in * x2.dtype.itemsize
                      + M_out * L_out * 4)
    bytes_accessed = int(mat_bytes + x2.size * x2.dtype.itemsize
                         + G * M_out * L_out * 4)
    vmem_limit = int(min(max(4 * per_step_bytes, 16 * 1024 * 1024),
                         64 * 1024 * 1024))

    raw = pl.pallas_call(
        _block4mag_kernel,
        out_shape=jax.ShapeDtypeStruct((G, M_out, L_out), jnp.float32),
        grid_spec=pltpu.PrefetchScalarGridSpec(
            num_scalar_prefetch=0,
            grid=(G,),
            in_specs=in_specs,
            out_specs=out_spec,
        ),
        compiler_params=pltpu.CompilerParams(
            dimension_semantics=("parallel",),
            vmem_limit_bytes=vmem_limit),
        cost_estimate=pl.CostEstimate(flops=int(flops),
                                      transcendentals=int(G * M_out * L_out),
                                      bytes_accessed=bytes_accessed),
    )(*mats[:6], x2, *mats[6:])

    # Unfold: (G, g*Nc, bb*Cout) -> (B, Nc, Cout)
    return (raw.reshape(G, g, Nc, bb, Cout).transpose(0, 1, 3, 2, 4)
               .reshape(B, Nc, Cout))


# ----------------------------- pure-JAX reference ---------------------------
def _reference(x, P, A, params):
    """Faithful per-layer f32 reference of the PyTorch forward."""
    hp = jax.lax.Precision.HIGHEST

    def gc(h, k):
        agg = jnp.einsum("ij,bjc->bic", A, h, precision=hp)
        return (jnp.einsum("bic,co->bio", h, params[f"w{k}_root"], precision=hp)
                + jnp.einsum("bic,co->bio", agg, params[f"w{k}_nbr"], precision=hp)
                + params[f"b{k}"])

    h = jnp.einsum("ij,bjc->bic", P, x, precision=hp)      # CustomPoolingAdd
    h = gc(h, 1)
    h = gc(h, 2)
    mean = jnp.mean(h, axis=1, keepdims=True)
    var = jnp.mean((h - mean) ** 2, axis=1, keepdims=True)
    h = (h - mean) / jnp.sqrt(var + EPS)                    # InstanceNorm1d
    h = gc(h, 3)
    h = gc(h, 4)
    return h


# ------------------------------- driver --------------------------------------
if __name__ == "__main__":
    B, Nf, Nc = 16, 64, 32          # batch, fine nodes, coarse nodes
    Cin, Cout = 8, 16               # in_channels, out_channels
    E = 256                         # point-point edges on the coarse graph

    key = jax.random.PRNGKey(0)
    keys = jax.random.split(key, 20)

    # node features (B, Nf, Cin)
    x = jax.random.normal(keys[0], (B, Nf, Cin), dtype=jnp.float32)

    # --- graphPoolData['pooling']: fine -> coarse edges with scalar attrs ----
    pool_dst = jax.random.randint(keys[1], (Nf,), 0, Nc)
    pool_src = jnp.arange(Nf)
    pool_attr = jax.random.uniform(keys[2], (Nf,), dtype=jnp.float32)
    # densify: P[dst, src] += attr   (CustomPoolingAdd scatter-add)
    P = jnp.zeros((Nc, Nf), jnp.float32).at[pool_dst, pool_src].add(pool_attr)

    # --- graphData['pointPoint']: coarse-graph edges with scalar attrs ------
    ei_src = jax.random.randint(keys[3], (E,), 0, Nc)
    ei_dst = jax.random.randint(keys[4], (E,), 0, Nc)
    e_attr = jax.random.uniform(keys[5], (E,), dtype=jnp.float32)
    # densify: A[dst, src] += attr   (weighted add-aggregation)
    A = jnp.zeros((Nc, Nc), jnp.float32).at[ei_dst, ei_src].add(e_attr)

    # --- deterministic synthetic parameters ---------------------------------
    def lin_init(k, fan_in, fan_out):
        bound = 1.0 / np.sqrt(fan_in)
        return jax.random.uniform(k, (fan_in, fan_out), jnp.float32,
                                  -bound, bound)

    params = {}
    cins = [Cin, Cout, Cout, Cout]
    for i, k in enumerate((1, 2, 3, 4)):
        ci = cins[i]
        params[f"w{k}_root"] = lin_init(keys[6 + 3 * i], ci, Cout)
        params[f"w{k}_nbr"] = lin_init(keys[7 + 3 * i], ci, Cout)
        bscale = 1.0 / np.sqrt(ci)
        params[f"b{k}"] = jax.random.uniform(keys[8 + 3 * i], (1, Cout),
                                             jnp.float32, -bscale, bscale)

    ref = _reference(x, P, A, params)

    # f32 path, default config: bb=8 (128 output lanes), g=1, G=2 grid steps
    # (both v7x TensorCores busy).  Weight prep is hoisted and reused.
    cfg32, mats32 = prepare_conv_block4_mag(P, A, params, batch=B,
                                            compute_dtype=jnp.float32)
    out_f32 = jax.block_until_ready(run_conv_block4_mag(x, mats32, cfg32))
    np.testing.assert_allclose(np.asarray(out_f32), np.asarray(ref),
                               rtol=1e-3, atol=1e-3)

    # bf16 operand path (default dtype), default fusion (bb=8, g=1, G=2).
    cfg_bf, mats_bf = prepare_conv_block4_mag(P, A, params, batch=B)
    out_bf = jax.block_until_ready(run_conv_block4_mag(x, mats_bf, cfg_bf))
    np.testing.assert_allclose(np.asarray(out_bf), np.asarray(ref),
                               rtol=6e-2, atol=6e-2)

    # bf16 with explicit row stacking (g=2 -> M=64 rows, single fat step for
    # single-TC v5e/v6e style usage); exercises the block-diagonal path.
    cfg_rg, mats_rg = prepare_conv_block4_mag(P, A, params, batch=B,
                                              batch_lanes=8, row_groups=2)
    out_rg = jax.block_until_ready(run_conv_block4_mag(x, mats_rg, cfg_rg))
    np.testing.assert_allclose(np.asarray(out_rg), np.asarray(ref),
                               rtol=6e-2, atol=6e-2)

    # TODO(synk): CustomPoolingAdd / CustomGraphConvPointPoint source was not
    # provided; they are modeled as weighted scatter-add pooling and
    # root+neighbour linear message passing (GraphConv-style 'add' aggregation).
    print("KERNEL_OK")
</pallas_src>

<mosaic_0001>
module attributes {stable_mosaic.version = 11 : i64} {
  func.func @_block4mag_kernel(%arg0: i32, %arg1: memref<32x64xf32, #tpu.memory_space<vmem>>, %arg2: memref<32x64xf32, #tpu.memory_space<vmem>>, %arg3: memref<32x64xf32, #tpu.memory_space<vmem>>, %arg4: memref<32x32xf32, #tpu.memory_space<vmem>>, %arg5: memref<32x32xf32, #tpu.memory_space<vmem>>, %arg6: memref<32x32xf32, #tpu.memory_space<vmem>>, %arg7: memref<1x64x64xf32, #tpu.memory_space<vmem>>, %arg8: memref<64x128xf32, #tpu.memory_space<vmem>>, %arg9: memref<64x128xf32, #tpu.memory_space<vmem>>, %arg10: memref<64x128xf32, #tpu.memory_space<vmem>>, %arg11: memref<32x128xf32, #tpu.memory_space<vmem>>, %arg12: memref<128x128xf32, #tpu.memory_space<vmem>>, %arg13: memref<128x128xf32, #tpu.memory_space<vmem>>, %arg14: memref<128x128xf32, #tpu.memory_space<vmem>>, %arg15: memref<32x128xf32, #tpu.memory_space<vmem>>, %arg16: memref<1x32x128xf32, #tpu.memory_space<vmem>>) attributes {dimension_semantics = [#tpu.dimension_semantics<parallel>], iteration_bounds = array<i64: 2>, scalar_prefetch = 0 : i64, scratch_operands = 0 : i64, tpu.core_type = #tpu.core_type<tc>, window_params = [{pipeline_mode = #tpu.pipeline_mode<synchronous>, transform_indices = @transform_0, window_bounds = array<i64: 32, 64>}, {pipeline_mode = #tpu.pipeline_mode<synchronous>, transform_indices = @transform_1, window_bounds = array<i64: 32, 64>}, {pipeline_mode = #tpu.pipeline_mode<synchronous>, transform_indices = @transform_2, window_bounds = array<i64: 32, 64>}, {pipeline_mode = #tpu.pipeline_mode<synchronous>, transform_indices = @transform_3, window_bounds = array<i64: 32, 32>}, {pipeline_mode = #tpu.pipeline_mode<synchronous>, transform_indices = @transform_4, window_bounds = array<i64: 32, 32>}, {pipeline_mode = #tpu.pipeline_mode<synchronous>, transform_indices = @transform_5, window_bounds = array<i64: 32, 32>}, {transform_indices = @transform_6, window_bounds = array<i64: 1, 64, 64>}, {pipeline_mode = #tpu.pipeline_mode<synchronous>, transform_indices = @transform_7, window_bounds = array<i64: 64, 128>}, {pipeline_mode = #tpu.pipeline_mode<synchronous>, transform_indices = @transform_8, window_bounds = array<i64: 64, 128>}, {pipeline_mode = #tpu.pipeline_mode<synchronous>, transform_indices = @transform_9, window_bounds = array<i64: 64, 128>}, {pipeline_mode = #tpu.pipeline_mode<synchronous>, transform_indices = @transform_10, window_bounds = array<i64: 32, 128>}, {pipeline_mode = #tpu.pipeline_mode<synchronous>, transform_indices = @transform_11, window_bounds = array<i64: 128, 128>}, {pipeline_mode = #tpu.pipeline_mode<synchronous>, transform_indices = @transform_12, window_bounds = array<i64: 128, 128>}, {pipeline_mode = #tpu.pipeline_mode<synchronous>, transform_indices = @transform_13, window_bounds = array<i64: 128, 128>}, {pipeline_mode = #tpu.pipeline_mode<synchronous>, transform_indices = @transform_14, window_bounds = array<i64: 32, 128>}, {transform_indices = @transform_15, window_bounds = array<i64: 1, 32, 128>}]} {
    %c0 = arith.constant 0 : index
    %c0_0 = arith.constant 0 : index
    %c0_1 = arith.constant 0 : index
    %0 = vector.load %arg7[%c0, %c0_0, %c0_1] : memref<1x64x64xf32, #tpu.memory_space<vmem>>, vector<1x64x64xf32>
    %1 = vector.shape_cast %0 : vector<1x64x64xf32> to vector<64x64xf32>
    %c0_2 = arith.constant 0 : index
    %c0_3 = arith.constant 0 : index
    %2 = vector.load %arg1[%c0_2, %c0_3] : memref<32x64xf32, #tpu.memory_space<vmem>>, vector<32x64xf32>
    %cst = arith.constant dense<0.000000e+00> : vector<32x64xf32>
    %3 = tpu.matmul %2, %1, %cst {dimension_numbers = #tpu.dot_dimension_numbers<[1], [0], [0], [1], [0, 0, 1, 1], [], []>} : vector<32x64xf32>, vector<64x64xf32>, vector<32x64xf32> -> vector<32x64xf32>
    %c0_4 = arith.constant 0 : index
    %c0_5 = arith.constant 0 : index
    %4 = vector.load %arg2[%c0_4, %c0_5] : memref<32x64xf32, #tpu.memory_space<vmem>>, vector<32x64xf32>
    %cst_6 = arith.constant dense<0.000000e+00> : vector<32x64xf32>
    %5 = tpu.matmul %4, %1, %cst_6 {dimension_numbers = #tpu.dot_dimension_numbers<[1], [0], [0], [1], [0, 0, 1, 1], [], []>} : vector<32x64xf32>, vector<64x64xf32>, vector<32x64xf32> -> vector<32x64xf32>
    %c0_7 = arith.constant 0 : index
    %c0_8 = arith.constant 0 : index
    %6 = vector.load %arg3[%c0_7, %c0_8] : memref<32x64xf32, #tpu.memory_space<vmem>>, vector<32x64xf32>
    %cst_9 = arith.constant dense<0.000000e+00> : vector<32x64xf32>
    %7 = tpu.matmul %6, %1, %cst_9 {dimension_numbers = #tpu.dot_dimension_numbers<[1], [0], [0], [1], [0, 0, 1, 1], [], []>} : vector<32x64xf32>, vector<64x64xf32>, vector<32x64xf32> -> vector<32x64xf32>
    %c0_10 = arith.constant 0 : index
    %c0_11 = arith.constant 0 : index
    %8 = vector.load %arg8[%c0_10, %c0_11] : memref<64x128xf32, #tpu.memory_space<vmem>>, vector<64x128xf32>
    %cst_12 = arith.constant dense<0.000000e+00> : vector<32x128xf32>
    %9 = tpu.matmul %3, %8, %cst_12 {dimension_numbers = #tpu.dot_dimension_numbers<[1], [0], [0], [1], [0, 0, 1, 1], [], []>} : vector<32x64xf32>, vector<64x128xf32>, vector<32x128xf32> -> vector<32x128xf32>
    %c0_13 = arith.constant 0 : index
    %c0_14 = arith.constant 0 : index
    %10 = vector.load %arg9[%c0_13, %c0_14] : memref<64x128xf32, #tpu.memory_space<vmem>>, vector<64x128xf32>
    %cst_15 = arith.constant dense<0.000000e+00> : vector<32x128xf32>
    %11 = tpu.matmul %5, %10, %cst_15 {dimension_numbers = #tpu.dot_dimension_numbers<[1], [0], [0], [1], [0, 0, 1, 1], [], []>} : vector<32x64xf32>, vector<64x128xf32>, vector<32x128xf32> -> vector<32x128xf32>
    %12 = arith.addf %9, %11 : vector<32x128xf32>
    %c0_16 = arith.constant 0 : index
    %c0_17 = arith.constant 0 : index
    %13 = vector.load %arg10[%c0_16, %c0_17] : memref<64x128xf32, #tpu.memory_space<vmem>>, vector<64x128xf32>
    %cst_18 = arith.constant dense<0.000000e+00> : vector<32x128xf32>
    %14 = tpu.matmul %7, %13, %cst_18 {dimension_numbers = #tpu.dot_dimension_numbers<[1], [0], [0], [1], [0, 0, 1, 1], [], []>} : vector<32x64xf32>, vector<64x128xf32>, vector<32x128xf32> -> vector<32x128xf32>
    %15 = arith.addf %12, %14 : vector<32x128xf32>
    %c0_19 = arith.constant 0 : index
    %c0_20 = arith.constant 0 : index
    %16 = vector.load %arg11[%c0_19, %c0_20] : memref<32x128xf32, #tpu.memory_space<vmem>>, vector<32x128xf32>
    %17 = arith.addf %15, %16 : vector<32x128xf32>
    %c0_21 = arith.constant 0 : index
    %c0_22 = arith.constant 0 : index
    %18 = vector.load %arg6[%c0_21, %c0_22] : memref<32x32xf32, #tpu.memory_space<vmem>>, vector<32x32xf32>
    %cst_23 = arith.constant dense<0.000000e+00> : vector<32x128xf32>
    %19 = tpu.matmul %18, %17, %cst_23 {dimension_numbers = #tpu.dot_dimension_numbers<[1], [0], [0], [1], [0, 0, 1, 1], [], []>} : vector<32x32xf32>, vector<32x128xf32>, vector<32x128xf32> -> vector<32x128xf32>
    %20 = arith.mulf %17, %17 : vector<32x128xf32>
    %cst_24 = arith.constant dense<0.000000e+00> : vector<32x128xf32>
    %21 = tpu.matmul %18, %20, %cst_24 {dimension_numbers = #tpu.dot_dimension_numbers<[1], [0], [0], [1], [0, 0, 1, 1], [], []>} : vector<32x32xf32>, vector<32x128xf32>, vector<32x128xf32> -> vector<32x128xf32>
    %22 = arith.mulf %19, %19 : vector<32x128xf32>
    %23 = arith.subf %21, %22 : vector<32x128xf32>
    %cst_25 = arith.constant 0.000000e+00 : f32
    %24 = vector.broadcast %cst_25 : f32 to vector<32x128xf32>
    %25 = arith.maximumf %23, %24 : vector<32x128xf32>
    %26 = arith.subf %17, %19 : vector<32x128xf32>
    %cst_26 = arith.constant 9.99999974E-6 : f32
    %27 = vector.broadcast %cst_26 : f32 to vector<32x128xf32>
    %28 = arith.addf %25, %27 : vector<32x128xf32>
    %29 = math.rsqrt %28 : vector<32x128xf32>
    %30 = arith.mulf %26, %29 : vector<32x128xf32>
    %c0_27 = arith.constant 0 : index
    %c0_28 = arith.constant 0 : index
    %31 = vector.load %arg4[%c0_27, %c0_28] : memref<32x32xf32, #tpu.memory_space<vmem>>, vector<32x32xf32>
    %cst_29 = arith.constant dense<0.000000e+00> : vector<32x128xf32>
    %32 = tpu.matmul %31, %30, %cst_29 {dimension_numbers = #tpu.dot_dimension_numbers<[1], [0], [0], [1], [0, 0, 1, 1], [], []>} : vector<32x32xf32>, vector<32x128xf32>, vector<32x128xf32> -> vector<32x128xf32>
    %c0_30 = arith.constant 0 : index
    %c0_31 = arith.constant 0 : index
    %33 = vector.load %arg5[%c0_30, %c0_31] : memref<32x32xf32, #tpu.memory_space<vmem>>, vector<32x32xf32>
    %cst_32 = arith.constant dense<0.000000e+00> : vector<32x128xf32>
    %34 = tpu.matmul %33, %30, %cst_32 {dimension_numbers = #tpu.dot_dimension_numbers<[1], [0], [0], [1], [0, 0, 1, 1], [], []>} : vector<32x32xf32>, vector<32x128xf32>, vector<32x128xf32> -> vector<32x128xf32>
    %c0_33 = arith.constant 0 : index
    %c0_34 = arith.constant 0 : index
    %35 = vector.load %arg12[%c0_33, %c0_34] : memref<128x128xf32, #tpu.memory_space<vmem>>, vector<128x128xf32>
    %cst_35 = arith.constant dense<0.000000e+00> : vector<32x128xf32>
    %36 = tpu.matmul %30, %35, %cst_35 {dimension_numbers = #tpu.dot_dimension_numbers<[1], [0], [0], [1], [0, 0, 1, 1], [], []>} : vector<32x128xf32>, vector<128x128xf32>, vector<32x128xf32> -> vector<32x128xf32>
    %c0_36 = arith.constant 0 : index
    %c0_37 = arith.constant 0 : index
    %37 = vector.load %arg13[%c0_36, %c0_37] : memref<128x128xf32, #tpu.memory_space<vmem>>, vector<128x128xf32>
    %cst_38 = arith.constant dense<0.000000e+00> : vector<32x128xf32>
    %38 = tpu.matmul %32, %37, %cst_38 {dimension_numbers = #tpu.dot_dimension_numbers<[1], [0], [0], [1], [0, 0, 1, 1], [], []>} : vector<32x128xf32>, vector<128x128xf32>, vector<32x128xf32> -> vector<32x128xf32>
    %39 = arith.addf %36, %38 : vector<32x128xf32>
    %c0_39 = arith.constant 0 : index
    %c0_40 = arith.constant 0 : index
    %40 = vector.load %arg14[%c0_39, %c0_40] : memref<128x128xf32, #tpu.memory_space<vmem>>, vector<128x128xf32>
    %cst_41 = arith.constant dense<0.000000e+00> : vector<32x128xf32>
    %41 = tpu.matmul %34, %40, %cst_41 {dimension_numbers = #tpu.dot_dimension_numbers<[1], [0], [0], [1], [0, 0, 1, 1], [], []>} : vector<32x128xf32>, vector<128x128xf32>, vector<32x128xf32> -> vector<32x128xf32>
    %42 = arith.addf %39, %41 : vector<32x128xf32>
    %c0_42 = arith.constant 0 : index
    %c0_43 = arith.constant 0 : index
    %43 = vector.load %arg15[%c0_42, %c0_43] : memref<32x128xf32, #tpu.memory_space<vmem>>, vector<32x128xf32>
    %44 = arith.addf %42, %43 : vector<32x128xf32>
    %c0_44 = arith.constant 0 : index
    %c0_45 = arith.constant 0 : index
    %c0_46 = arith.constant 0 : index
    %45 = vector.load %arg16[%c0_44, %c0_45, %c0_46] : memref<1x32x128xf32, #tpu.memory_space<vmem>>, vector<1x32x128xf32>
    %46 = vector.shape_cast %45 : vector<1x32x128xf32> to vector<32x128xf32>
    %47 = vector.shape_cast %44 : vector<32x128xf32> to vector<1x32x128xf32>
    tpu.vector_store %arg16[%c0_44, %c0_45, %c0_46], %47 {strides = array<i32>} : memref<1x32x128xf32, #tpu.memory_space<vmem>>, vector<1x32x128xf32>,
    return
  }
  func.func @transform_0(%arg0: i32) -> (i32, i32) {
    %c0_i32 = arith.constant 0 : i32
    %c0_i32_0 = arith.constant 0 : i32
    %c0_i32_1 = arith.constant 0 : i32
    return %c0_i32, %c0_i32_0 : i32, i32
  }
  func.func @transform_1(%arg0: i32) -> (i32, i32) {
    %c0_i32 = arith.constant 0 : i32
    %c0_i32_0 = arith.constant 0 : i32
    %c0_i32_1 = arith.constant 0 : i32
    return %c0_i32, %c0_i32_0 : i32, i32
  }
  func.func @transform_2(%arg0: i32) -> (i32, i32) {
    %c0_i32 = arith.constant 0 : i32
    %c0_i32_0 = arith.constant 0 : i32
    %c0_i32_1 = arith.constant 0 : i32
    return %c0_i32, %c0_i32_0 : i32, i32
  }
  func.func @transform_3(%arg0: i32) -> (i32, i32) {
    %c0_i32 = arith.constant 0 : i32
    %c0_i32_0 = arith.constant 0 : i32
    %c0_i32_1 = arith.constant 0 : i32
    return %c0_i32, %c0_i32_0 : i32, i32
  }
  func.func @transform_4(%arg0: i32) -> (i32, i32) {
    %c0_i32 = arith.constant 0 : i32
    %c0_i32_0 = arith.constant 0 : i32
    %c0_i32_1 = arith.constant 0 : i32
    return %c0_i32, %c0_i32_0 : i32, i32
  }
  func.func @transform_5(%arg0: i32) -> (i32, i32) {
    %c0_i32 = arith.constant 0 : i32
    %c0_i32_0 = arith.constant 0 : i32
    %c0_i32_1 = arith.constant 0 : i32
    return %c0_i32, %c0_i32_0 : i32, i32
  }
  func.func @transform_6(%arg0: i32) -> (i32, i32, i32) {
    %c0_i32 = arith.constant 0 : i32
    %c0_i32_0 = arith.constant 0 : i32
    %c0_i32_1 = arith.constant 0 : i32
    return %arg0, %c0_i32, %c0_i32_0 : i32, i32, i32
  }
  func.func @transform_7(%arg0: i32) -> (i32, i32) {
    %c0_i32 = arith.constant 0 : i32
    %c0_i32_0 = arith.constant 0 : i32
    %c0_i32_1 = arith.constant 0 : i32
    return %c0_i32, %c0_i32_0 : i32, i32
  }
  func.func @transform_8(%arg0: i32) -> (i32, i32) {
    %c0_i32 = arith.constant 0 : i32
    %c0_i32_0 = arith.constant 0 : i32
    %c0_i32_1 = arith.constant 0 : i32
    return %c0_i32, %c0_i32_0 : i32, i32
  }
  func.func @transform_9(%arg0: i32) -> (i32, i32) {
    %c0_i32 = arith.constant 0 : i32
    %c0_i32_0 = arith.constant 0 : i32
    %c0_i32_1 = arith.constant 0 : i32
    return %c0_i32, %c0_i32_0 : i32, i32
  }
  func.func @transform_10(%arg0: i32) -> (i32, i32) {
    %c0_i32 = arith.constant 0 : i32
    %c0_i32_0 = arith.constant 0 : i32
    %c0_i32_1 = arith.constant 0 : i32
    return %c0_i32, %c0_i32_0 : i32, i32
  }
  func.func @transform_11(%arg0: i32) -> (i32, i32) {
    %c0_i32 = arith.constant 0 : i32
    %c0_i32_0 = arith.constant 0 : i32
    %c0_i32_1 = arith.constant 0 : i32
    return %c0_i32, %c0_i32_0 : i32, i32
  }
  func.func @transform_12(%arg0: i32) -> (i32, i32) {
    %c0_i32 = arith.constant 0 : i32
    %c0_i32_0 = arith.constant 0 : i32
    %c0_i32_1 = arith.constant 0 : i32
    return %c0_i32, %c0_i32_0 : i32, i32
  }
  func.func @transform_13(%arg0: i32) -> (i32, i32) {
    %c0_i32 = arith.constant 0 : i32
    %c0_i32_0 = arith.constant 0 : i32
    %c0_i32_1 = arith.constant 0 : i32
    return %c0_i32, %c0_i32_0 : i32, i32
  }
  func.func @transform_14(%arg0: i32) -> (i32, i32) {
    %c0_i32 = arith.constant 0 : i32
    %c0_i32_0 = arith.constant 0 : i32
    %c0_i32_1 = arith.constant 0 : i32
    return %c0_i32, %c0_i32_0 : i32, i32
  }
  func.func @transform_15(%arg0: i32) -> (i32, i32, i32) {
    %c0_i32 = arith.constant 0 : i32
    %c0_i32_0 = arith.constant 0 : i32
    %c0_i32_1 = arith.constant 0 : i32
    return %arg0, %c0_i32, %c0_i32_0 : i32, i32, i32
  }
}

</mosaic_0001>

<llo_original>
// kernel: run_conv_block4_mag.1
$region0: #{run_conv_block4_mag.1}
  #allocation0 [shape = 'u32[]', space=smem, size = 0x4, offset = 0x4, fixed_abs, tag = 'smem constant byte address 0x4 - core index']
  #allocation1 [shape = 'u32[144,128]{1,0:T(1,128)}', space=vmem, size = 0x12000, scoped, tag = 'internal scratch']
  %s0 = inlined_call_operand.hbm [shape: f32[32,64], index: 0, kind: input, shape index: {}]
  %s1 = inlined_call_operand.hbm [shape: f32[32,64], index: 1, kind: input, shape index: {}]
  %s2 = inlined_call_operand.hbm [shape: f32[32,64], index: 2, kind: input, shape index: {}]
  %s3 = inlined_call_operand.hbm [shape: f32[32,32], index: 3, kind: input, shape index: {}]
  %s4 = inlined_call_operand.hbm [shape: f32[32,32], index: 4, kind: input, shape index: {}]
  %s5 = inlined_call_operand.hbm [shape: f32[32,32], index: 5, kind: input, shape index: {}]
  %s6 = inlined_call_operand.vmem [shape: f32[2,64,64], index: 6, kind: input, shape index: {}]
  %s7 = inlined_call_operand.hbm [shape: f32[64,128], index: 7, kind: input, shape index: {}]
  %s8 = inlined_call_operand.hbm [shape: f32[64,128], index: 8, kind: input, shape index: {}]
  %s9 = inlined_call_operand.hbm [shape: f32[64,128], index: 9, kind: input, shape index: {}]
  %s10 = inlined_call_operand.vmem [shape: f32[32,128], index: 10, kind: input, shape index: {}]
  %s11 = inlined_call_operand.vmem [shape: f32[128,128], index: 11, kind: input, shape index: {}]
  %s12 = inlined_call_operand.vmem [shape: f32[128,128], index: 12, kind: input, shape index: {}]
  %s13 = inlined_call_operand.hbm [shape: f32[128,128], index: 13, kind: input, shape index: {}]
  %s14 = inlined_call_operand.hbm [shape: f32[32,128], index: 14, kind: input, shape index: {}]
  %s15 = inlined_call_operand.vmem [shape: f32[2,32,128], index: 15, kind: output, shape index: {}]
  %s16 = sld [smem:[#allocation0]]
  $region137: #{run_conv_block4_mag.1} parent=0
    _
  %s18 = ssub.s32 1, %s16
  %s19 = scalar_select 0, %s18, %s16
  $region1: #{run_conv_block4_mag.1} parent=0
    #allocation2 [shape = 'u8[16384]{0}', space=vmem, size = 0x4000, scoped, tag = 'input window, operand 0, single buffered']
    #allocation3 [shape = 's32[2]{0}', space=sflag, size = 0x8, scoped, tag = 'scoped memory for run_conv_block4_mag.1']
    #allocation4 [shape = 'u8[16384]{0}', space=vmem, size = 0x4000, scoped, tag = 'input window, operand 1, single buffered']
    #allocation5 [shape = 's32[1]{0}', space=sflag, size = 0x4, scoped, tag = 'scoped memory for run_conv_block4_mag.1']
    #allocation6 [shape = 'u8[16384]{0}', space=vmem, size = 0x4000, scoped, tag = 'input window, operand 2, single buffered']
    #allocation7 [shape = 'u8[16384]{0}', space=vmem, size = 0x4000, scoped, tag = 'input window, operand 3, single buffered']
    #allocation8 [shape = 's32[1]{0}', space=sflag, size = 0x4, scoped, tag = 'scoped memory for run_conv_block4_mag.1']
    #allocation9 [shape = 'u8[16384]{0}', space=vmem, size = 0x4000, scoped, tag = 'input window, operand 4, single buffered']
    #allocation10 [shape = 'u8[16384]{0}', space=vmem, size = 0x4000, scoped, tag = 'input window, operand 5, single buffered']
    #allocation11 [shape = 's32[1]{0}', space=sflag, size = 0x4, scoped, tag = 'scoped memory for run_conv_block4_mag.1']
    #allocation12 [shape = 'u8[32768]{0}', space=vmem, size = 0x8000, scoped, tag = 'input window, operand 7, single buffered']
    #allocation13 [shape = 'u8[32768]{0}', space=vmem, size = 0x8000, scoped, tag = 'input window, operand 8, single buffered']
    #allocation14 [shape = 's32[1]{0}', space=sflag, size = 0x4, scoped, tag = 'scoped memory for run_conv_block4_mag.1']
    #allocation15 [shape = 'u8[32768]{0}', space=vmem, size = 0x8000, scoped, tag = 'input window, operand 9, single buffered']
    #allocation16 [shape = 'u8[65536]{0}', space=vmem, size = 0x10000, scoped, tag = 'input window, operand 13, single buffered']
    #allocation17 [shape = 's32[1]{0}', space=sflag, size = 0x4, scoped, tag = 'scoped memory for run_conv_block4_mag.1']
    #allocation18 [shape = 'u8[16384]{0}', space=vmem, size = 0x4000, scoped, tag = 'input window, operand 14, single buffered']
    %20 = vsyncpa [#allocation3], 0
    %21 = vsyncpa [#allocation5], 0
    %22 = vsyncpa [#allocation8], 0
    %23 = vsyncpa [#allocation11], 0
    %24 = vsyncpa [#allocation14], 0
    %25 = vsyncpa [#allocation17], 0
    loop: start=0, step=1, limit=4
    $region2: #{run_conv_block4_mag.1} parent=1 // loop_pre_header
      _
    $region3: #{run_conv_block4_mag.1} parent=1 // loop_header
      %s27 = sphi 0, %s31
      %p28 = scmp.ge.s32.totalorder %s27, 4
      %s35 = sphi 0, %s35
      %s37 = sphi 0, %s35
      %s38 = sphi 0, %s37
      %s52 = sphi 0, %s38
      %s56 = sphi 0, %s56
      %s58 = sphi 0, %s56
      %s59 = sphi 0, %s58
      %s73 = sphi 0, %s59
      %s77 = sphi 0, %s77
      %s79 = sphi 0, %s77
      %s80 = sphi 0, %s79
      %s94 = sphi 0, %s80
      %s98 = sphi 0, %s98
      %s100 = sphi 0, %s98
      %s101 = sphi 0, %s100
      %s115 = sphi 0, %s101
      %s119 = sphi 0, %s119
      %s121 = sphi 0, %s119
      %s122 = sphi 0, %s121
      %s136 = sphi 0, %s122
      %s140 = sphi 0, %s140
      %s142 = sphi 0, %s140
      %s143 = sphi 0, %s142
      %s157 = sphi 0, %s143
      %s163 = sphi 0, %s165
      %s166 = sphi 0, %s163
      %s167 = sphi 0, %s166
      %s183 = sphi 0, %s167
      %s187 = sphi 0, %s187
      %s189 = sphi 0, %s187
      %s190 = sphi 0, %s189
      %s204 = sphi 0, %s190
      %s208 = sphi 0, %s208
      %s210 = sphi 0, %s208
      %s211 = sphi 0, %s210
      %s225 = sphi 0, %s211
      %s229 = sphi 0, %s229
      %s231 = sphi 0, %s229
      %s232 = sphi 0, %s231
      %s246 = sphi 0, %s232
      %s250 = sphi 0, %s250
      %s252 = sphi 0, %s250
      %s253 = sphi 0, %s252
      %s267 = sphi 0, %s253
      %s271 = sphi 0, %s271
      %s273 = sphi 0, %s271
      %s274 = sphi 0, %s273
      %s288 = sphi 0, %s274
      %s292 = sphi 0, %s292
      %s294 = sphi 0, %s292
      %s295 = sphi 0, %s294
      %s309 = sphi 0, %s295
      %s313 = sphi 0, %s313
      %s315 = sphi 0, %s313
      %s316 = sphi 0, %s315
      %s330 = sphi 0, %s316
      %s334 = sphi 0, %s334
      %s336 = sphi 0, %s334
      %s337 = sphi 0, %s336
      %s351 = sphi 0, %s337
      %s357 = sphi 0, %s359
      %s360 = sphi 0, %s357
      %s361 = sphi 0, %s360
      %s377 = sphi 0, %s361
    $region4: #{run_conv_block4_mag.1} parent=1 // loop_header_branch
      %30 = sbr.rel (%p28) target = $region8
    $region5: #{run_conv_block4_mag.1} parent=1 // loop_body
      %s32 = ssub.s32 %s27, 1
      %s33 = ssub.s32 %s27, 2
      %s34 = sadd.s32 %s27, 1
      %s36 = sadd.s32 %s35, 1
      %p39 = scmp.eq.s32.totalorder %s27, 1
      %p40 = scmp.ne.s32.totalorder %s35, %s37
      %p41 = scmp.eq.s32.totalorder %s27, 0
      %p42 = por %p40, %p41
      %p43 = scmp.ne.s32.totalorder %s35, %s37
      %p44 = scmp.eq.s32.totalorder %s32, 1
      %p45 = por %p43, %p44
      %p46 = scmp.ne.s32.totalorder %s37, %s38
      %p47 = scmp.eq.s32.totalorder %s32, 0
      %p48 = por %p46, %p47
      %p49 = scmp.ne.s32.totalorder %s37, %s38
      %p50 = scmp.eq.s32.totalorder %s33, 1
      %p51 = por %p49, %p50
      %p53 = scmp.ne.s32.totalorder %s38, %s52
      %p54 = scmp.eq.s32.totalorder %s33, 0
      %p55 = por %p53, %p54
      %s57 = sadd.s32 %s56, 1
      %p60 = scmp.eq.s32.totalorder %s27, 1
      %p61 = scmp.ne.s32.totalorder %s56, %s58
      %p62 = scmp.eq.s32.totalorder %s27, 0
      %p63 = por %p61, %p62
      %p64 = scmp.ne.s32.totalorder %s56, %s58
      %p65 = scmp.eq.s32.totalorder %s32, 1
      %p66 = por %p64, %p65
      %p67 = scmp.ne.s32.totalorder %s58, %s59
      %p68 = scmp.eq.s32.totalorder %s32, 0
      %p69 = por %p67, %p68
      %p70 = scmp.ne.s32.totalorder %s58, %s59
      %p71 = scmp.eq.s32.totalorder %s33, 1
      %p72 = por %p70, %p71
      %p74 = scmp.ne.s32.totalorder %s59, %s73
      %p75 = scmp.eq.s32.totalorder %s33, 0
      %p76 = por %p74, %p75
      %s78 = sadd.s32 %s77, 1
      %p81 = scmp.eq.s32.totalorder %s27, 1
      %p82 = scmp.ne.s32.totalorder %s77, %s79
      %p83 = scmp.eq.s32.totalorder %s27, 0
      %p84 = por %p82, %p83
      %p85 = scmp.ne.s32.totalorder %s77, %s79
      %p86 = scmp.eq.s32.totalorder %s32, 1
      %p87 = por %p85, %p86
      %p88 = scmp.ne.s32.totalorder %s79, %s80
      %p89 = scmp.eq.s32.totalorder %s32, 0
      %p90 = por %p88, %p89
      %p91 = scmp.ne.s32.totalorder %s79, %s80
      %p92 = scmp.eq.s32.totalorder %s33, 1
      %p93 = por %p91, %p92
      %p95 = scmp.ne.s32.totalorder %s80, %s94
      %p96 = scmp.eq.s32.totalorder %s33, 0
      %p97 = por %p95, %p96
      %s99 = sadd.s32 %s98, 1
      %p102 = scmp.eq.s32.totalorder %s27, 1
      %p103 = scmp.ne.s32.totalorder %s98, %s100
      %p104 = scmp.eq.s32.totalorder %s27, 0
      %p105 = por %p103, %p104
      %p106 = scmp.ne.s32.totalorder %s98, %s100
      %p107 = scmp.eq.s32.totalorder %s32, 1
      %p108 = por %p106, %p107
      %p109 = scmp.ne.s32.totalorder %s100, %s101
      %p110 = scmp.eq.s32.totalorder %s32, 0
      %p111 = por %p109, %p110
      %p112 = scmp.ne.s32.totalorder %s100, %s101
      %p113 = scmp.eq.s32.totalorder %s33, 1
      %p114 = por %p112, %p113
      %p116 = scmp.ne.s32.totalorder %s101, %s115
      %p117 = scmp.eq.s32.totalorder %s33, 0
      %p118 = por %p116, %p117
      %s120 = sadd.s32 %s119, 1
      %p123 = scmp.eq.s32.totalorder %s27, 1
      %p124 = scmp.ne.s32.totalorder %s119, %s121
      %p125 = scmp.eq.s32.totalorder %s27, 0
      %p126 = por %p124, %p125
      %p127 = scmp.ne.s32.totalorder %s119, %s121
      %p128 = scmp.eq.s32.totalorder %s32, 1
      %p129 = por %p127, %p128
      %p130 = scmp.ne.s32.totalorder %s121, %s122
      %p131 = scmp.eq.s32.totalorder %s32, 0
      %p132 = por %p130, %p131
      %p133 = scmp.ne.s32.totalorder %s121, %s122
      %p134 = scmp.eq.s32.totalorder %s33, 1
      %p135 = por %p133, %p134
      %p137 = scmp.ne.s32.totalorder %s122, %s136
      %p138 = scmp.eq.s32.totalorder %s33, 0
      %p139 = por %p137, %p138
      %s141 = sadd.s32 %s140, 1
      %p144 = scmp.eq.s32.totalorder %s27, 1
      %p145 = scmp.ne.s32.totalorder %s140, %s142
      %p146 = scmp.eq.s32.totalorder %s27, 0
      %p147 = por %p145, %p146
      %p148 = scmp.ne.s32.totalorder %s140, %s142
      %p149 = scmp.eq.s32.totalorder %s32, 1
      %p150 = por %p148, %p149
      %p151 = scmp.ne.s32.totalorder %s142, %s143
      %p152 = scmp.eq.s32.totalorder %s32, 0
      %p153 = por %p151, %p152
      %p154 = scmp.ne.s32.totalorder %s142, %s143
      %p155 = scmp.eq.s32.totalorder %s33, 1
      %p156 = por %p154, %p155
      %p158 = scmp.ne.s32.totalorder %s143, %s157
      %p159 = scmp.eq.s32.totalorder %s33, 0
      %p160 = por %p158, %p159
      %s161 = ssub.s32 %s27, %s34
      %p162 = scmp.eq.s32.totalorder %s161, 0
      %s164 = sadd.s32 %s163, 1
      %s165 = scalar_select %p162, %s163, %s164
      %p168 = pneg %p162
      %p169 = scmp.eq.s32.totalorder %s27, 1
      %p170 = por %p168, %p169
      %p171 = scmp.ne.s32.totalorder %s163, %s166
      %p172 = scmp.eq.s32.totalorder %s27, 0
      %p173 = por %p171, %p172
      %p174 = scmp.ne.s32.totalorder %s163, %s166
      %p175 = scmp.eq.s32.totalorder %s32, 1
      %p176 = por %p174, %p175
      %p177 = scmp.ne.s32.totalorder %s166, %s167
      %p178 = scmp.eq.s32.totalorder %s32, 0
      %p179 = por %p177, %p178
      %p180 = scmp.ne.s32.totalorder %s166, %s167
      %p181 = scmp.eq.s32.totalorder %s33, 1
      %p182 = por %p180, %p181
      %p184 = scmp.ne.s32.totalorder %s167, %s183
      %p185 = scmp.eq.s32.totalorder %s33, 0
      %p186 = por %p184, %p185
      %s188 = sadd.s32 %s187, 1
      %p191 = scmp.eq.s32.totalorder %s27, 1
      %p192 = scmp.ne.s32.totalorder %s187, %s189
      %p193 = scmp.eq.s32.totalorder %s27, 0
      %p194 = por %p192, %p193
      %p195 = scmp.ne.s32.totalorder %s187, %s189
      %p196 = scmp.eq.s32.totalorder %s32, 1
      %p197 = por %p195, %p196
      %p198 = scmp.ne.s32.totalorder %s189, %s190
      %p199 = scmp.eq.s32.totalorder %s32, 0
      %p200 = por %p198, %p199
      %p201 = scmp.ne.s32.totalorder %s189, %s190
      %p202 = scmp.eq.s32.totalorder %s33, 1
      %p203 = por %p201, %p202
      %p205 = scmp.ne.s32.totalorder %s190, %s204
      %p206 = scmp.eq.s32.totalorder %s33, 0
      %p207 = por %p205, %p206
      %s209 = sadd.s32 %s208, 1
      %p212 = scmp.eq.s32.totalorder %s27, 1
      %p213 = scmp.ne.s32.totalorder %s208, %s210
      %p214 = scmp.eq.s32.totalorder %s27, 0
      %p215 = por %p213, %p214
      %p216 = scmp.ne.s32.totalorder %s208, %s210
      %p217 = scmp.eq.s32.totalorder %s32, 1
      %p218 = por %p216, %p217
      %p219 = scmp.ne.s32.totalorder %s210, %s211
      %p220 = scmp.eq.s32.totalorder %s32, 0
      %p221 = por %p219, %p220
      %p222 = scmp.ne.s32.totalorder %s210, %s211
      %p223 = scmp.eq.s32.totalorder %s33, 1
      %p224 = por %p222, %p223
      %p226 = scmp.ne.s32.totalorder %s211, %s225
      %p227 = scmp.eq.s32.totalorder %s33, 0
      %p228 = por %p226, %p227
      %s230 = sadd.s32 %s229, 1
      %p233 = scmp.eq.s32.totalorder %s27, 1
      %p234 = scmp.ne.s32.totalorder %s229, %s231
      %p235 = scmp.eq.s32.totalorder %s27, 0
      %p236 = por %p234, %p235
      %p237 = scmp.ne.s32.totalorder %s229, %s231
      %p238 = scmp.eq.s32.totalorder %s32, 1
      %p239 = por %p237, %p238
      %p240 = scmp.ne.s32.totalorder %s231, %s232
      %p241 = scmp.eq.s32.totalorder %s32, 0
      %p242 = por %p240, %p241
      %p243 = scmp.ne.s32.totalorder %s231, %s232
      %p244 = scmp.eq.s32.totalorder %s33, 1
      %p245 = por %p243, %p244
      %p247 = scmp.ne.s32.totalorder %s232, %s246
      %p248 = scmp.eq.s32.totalorder %s33, 0
      %p249 = por %p247, %p248
      %s251 = sadd.s32 %s250, 1
      %p254 = scmp.eq.s32.totalorder %s27, 1
      %p255 = scmp.ne.s32.totalorder %s250, %s252
      %p256 = scmp.eq.s32.totalorder %s27, 0
      %p257 = por %p255, %p256
      %p258 = scmp.ne.s32.totalorder %s250, %s252
      %p259 = scmp.eq.s32.totalorder %s32, 1
      %p260 = por %p258, %p259
      %p261 = scmp.ne.s32.totalorder %s252, %s253
      %p262 = scmp.eq.s32.totalorder %s32, 0
      %p263 = por %p261, %p262
      %p264 = scmp.ne.s32.totalorder %s252, %s253
      %p265 = scmp.eq.s32.totalorder %s33, 1
      %p266 = por %p264, %p265
      %p268 = scmp.ne.s32.totalorder %s253, %s267
      %p269 = scmp.eq.s32.totalorder %s33, 0
      %p270 = por %p268, %p269
      %s272 = sadd.s32 %s271, 1
      %p275 = scmp.eq.s32.totalorder %s27, 1
      %p276 = scmp.ne.s32.totalorder %s271, %s273
      %p277 = scmp.eq.s32.totalorder %s27, 0
      %p278 = por %p276, %p277
      %p279 = scmp.ne.s32.totalorder %s271, %s273
      %p280 = scmp.eq.s32.totalorder %s32, 1
      %p281 = por %p279, %p280
      %p282 = scmp.ne.s32.totalorder %s273, %s274
      %p283 = scmp.eq.s32.totalorder %s32, 0
      %p284 = por %p282, %p283
      %p285 = scmp.ne.s32.totalorder %s273, %s274
      %p286 = scmp.eq.s32.totalorder %s33, 1
      %p287 = por %p285, %p286
      %p289 = scmp.ne.s32.totalorder %s274, %s288
      %p290 = scmp.eq.s32.totalorder %s33, 0
      %p291 = por %p289, %p290
      %s293 = sadd.s32 %s292, 1
      %p296 = scmp.eq.s32.totalorder %s27, 1
      %p297 = scmp.ne.s32.totalorder %s292, %s294
      %p298 = scmp.eq.s32.totalorder %s27, 0
      %p299 = por %p297, %p298
      %p300 = scmp.ne.s32.totalorder %s292, %s294
      %p301 = scmp.eq.s32.totalorder %s32, 1
      %p302 = por %p300, %p301
      %p303 = scmp.ne.s32.totalorder %s294, %s295
      %p304 = scmp.eq.s32.totalorder %s32, 0
      %p305 = por %p303, %p304
      %p306 = scmp.ne.s32.totalorder %s294, %s295
      %p307 = scmp.eq.s32.totalorder %s33, 1
      %p308 = por %p306, %p307
      %p310 = scmp.ne.s32.totalorder %s295, %s309
      %p311 = scmp.eq.s32.totalorder %s33, 0
      %p312 = por %p310, %p311
      %s314 = sadd.s32 %s313, 1
      %p317 = scmp.eq.s32.totalorder %s27, 1
      %p318 = scmp.ne.s32.totalorder %s313, %s315
      %p319 = scmp.eq.s32.totalorder %s27, 0
      %p320 = por %p318, %p319
      %p321 = scmp.ne.s32.totalorder %s313, %s315
      %p322 = scmp.eq.s32.totalorder %s32, 1
      %p323 = por %p321, %p322
      %p324 = scmp.ne.s32.totalorder %s315, %s316
      %p325 = scmp.eq.s32.totalorder %s32, 0
      %p326 = por %p324, %p325
      %p327 = scmp.ne.s32.totalorder %s315, %s316
      %p328 = scmp.eq.s32.totalorder %s33, 1
      %p329 = por %p327, %p328
      %p331 = scmp.ne.s32.totalorder %s316, %s330
      %p332 = scmp.eq.s32.totalorder %s33, 0
      %p333 = por %p331, %p332
      %s335 = sadd.s32 %s334, 1
      %p338 = scmp.eq.s32.totalorder %s27, 1
      %p339 = scmp.ne.s32.totalorder %s334, %s336
      %p340 = scmp.eq.s32.totalorder %s27, 0
      %p341 = por %p339, %p340
      %p342 = scmp.ne.s32.totalorder %s334, %s336
      %p343 = scmp.eq.s32.totalorder %s32, 1
      %p344 = por %p342, %p343
      %p345 = scmp.ne.s32.totalorder %s336, %s337
      %p346 = scmp.eq.s32.totalorder %s32, 0
      %p347 = por %p345, %p346
      %p348 = scmp.ne.s32.totalorder %s336, %s337
      %p349 = scmp.eq.s32.totalorder %s33, 1
      %p350 = por %p348, %p349
      %p352 = scmp.ne.s32.totalorder %s337, %s351
      %p353 = scmp.eq.s32.totalorder %s33, 0
      %p354 = por %p352, %p353
      %s355 = ssub.s32 %s27, %s34
      %p356 = scmp.eq.s32.totalorder %s355, 0
      %s358 = sadd.s32 %s357, 1
      %s359 = scalar_select %p356, %s357, %s358
      %p362 = pneg %p356
      %p363 = scmp.eq.s32.totalorder %s27, 1
      %p364 = por %p362, %p363
      %p365 = scmp.ne.s32.totalorder %s357, %s360
      %p366 = scmp.eq.s32.totalorder %s27, 0
      %p367 = por %p365, %p366
      %p368 = scmp.ne.s32.totalorder %s357, %s360
      %p369 = scmp.eq.s32.totalorder %s32, 1
      %p370 = por %p368, %p369
      %p371 = scmp.ne.s32.totalorder %s360, %s361
      %p372 = scmp.eq.s32.totalorder %s32, 0
      %p373 = por %p371, %p372
      %p374 = scmp.ne.s32.totalorder %s360, %s361
      %p375 = scmp.eq.s32.totalorder %s33, 1
      %p376 = por %p374, %p375
      %p378 = scmp.ne.s32.totalorder %s361, %s377
      %p379 = scmp.eq.s32.totalorder %s33, 0
      %p380 = por %p378, %p379
      %p381 = scmp.le.s32.totalorder 1, %s27
      %p382 = scmp.lt.s32.totalorder %s27, 3
      %p383 = pnand %p381, %p382
      %p384 = pneg %p383
      // Predicated region
      $region9: #{run_conv_block4_mag.1} parent=5 // pred_check
        _
      $region10: #{run_conv_block4_mag.1} parent=5 // pred_check_branch
        %386 = sbr.rel (%p383) target = $region12
      $region11: #{run_conv_block4_mag.1} parent=5 // pred_region
        %s387 = ssub.s32 %s27, 1
        // Predicated region
        $region13: #{run_conv_block4_mag.1} parent=11 // pred_check
          %p388 = pneg %p48
        $region14: #{run_conv_block4_mag.1} parent=11 // pred_check_branch
          %390 = sbr.rel (%p388) target = $region16
        $region15: #{run_conv_block4_mag.1} parent=11 // pred_region
          %s392 = ssub.s32 512, 512
          %393 = vsyncadd [#allocation3], %s392
          %s394 = sshll.u32 [#allocation2], 4
          %s395 = int_to_ptr.vmem [resolvable:$true] %s394
          %400 = dma.hbm_to_vmem [thread:$0]  %s0, 512, %s395, [#allocation3], 128, 128, 8
        $region16: #{run_conv_block4_mag.1} parent=11 // pred_fallthru
          _
        // Predicated region
        $region17: #{run_conv_block4_mag.1} parent=11 // pred_check
          %p401 = pneg %p69
        $region18: #{run_conv_block4_mag.1} parent=11 // pred_check_branch
          %403 = sbr.rel (%p401) target = $region20
        $region19: #{run_conv_block4_mag.1} parent=11 // pred_region
          %s405 = ssub.s32 512, 512
          %406 = vsyncadd [#allocation5], %s405
          %s407 = sshll.u32 [#allocation4], 4
          %s408 = int_to_ptr.vmem [resolvable:$true] %s407
          %413 = dma.hbm_to_vmem [thread:$0]  %s1, 512, %s408, [#allocation5], 128, 128, 8
        $region20: #{run_conv_block4_mag.1} parent=11 // pred_fallthru
          _
        // Predicated region
        $region21: #{run_conv_block4_mag.1} parent=11 // pred_check
          %p414 = pneg %p90
        $region22: #{run_conv_block4_mag.1} parent=11 // pred_check_branch
          %416 = sbr.rel (%p414) target = $region24
        $region23: #{run_conv_block4_mag.1} parent=11 // pred_region
          %s418 = ssub.s32 512, 512
          %419 = vsyncadd [#allocation5], %s418
          %s420 = sshll.u32 [#allocation6], 4
          %s421 = int_to_ptr.vmem [resolvable:$true] %s420
          %426 = dma.hbm_to_vmem [thread:$0]  %s2, 512, %s421, [#allocation5], 128, 128, 8
        $region24: #{run_conv_block4_mag.1} parent=11 // pred_fallthru
          _
        // Predicated region
        $region25: #{run_conv_block4_mag.1} parent=11 // pred_check
          %p427 = pneg %p111
        $region26: #{run_conv_block4_mag.1} parent=11 // pred_check_branch
          %429 = sbr.rel (%p427) target = $region28
        $region27: #{run_conv_block4_mag.1} parent=11 // pred_region
          %s431 = ssub.s32 512, 512
          %432 = vsyncadd [#allocation8], %s431
          %s433 = sshll.u32 [#allocation7], 4
          %s434 = int_to_ptr.vmem [resolvable:$true] %s433
          %439 = dma.hbm_to_vmem [thread:$0]  %s3, 512, %s434, [#allocation8], 128, 128, 8
        $region28: #{run_conv_block4_mag.1} parent=11 // pred_fallthru
          _
        // Predicated region
        $region29: #{run_conv_block4_mag.1} parent=11 // pred_check
          %p440 = pneg %p132
        $region30: #{run_conv_block4_mag.1} parent=11 // pred_check_branch
          %442 = sbr.rel (%p440) target = $region32
        $region31: #{run_conv_block4_mag.1} parent=11 // pred_region
          %s444 = ssub.s32 512, 512
          %445 = vsyncadd [#allocation8], %s444
          %s446 = sshll.u32 [#allocation9], 4
          %s447 = int_to_ptr.vmem [resolvable:$true] %s446
          %452 = dma.hbm_to_vmem [thread:$0]  %s4, 512, %s447, [#allocation8], 128, 128, 8
        $region32: #{run_conv_block4_mag.1} parent=11 // pred_fallthru
          _
        // Predicated region
        $region33: #{run_conv_block4_mag.1} parent=11 // pred_check
          %p453 = pneg %p153
        $region34: #{run_conv_block4_mag.1} parent=11 // pred_check_branch
          %455 = sbr.rel (%p453) target = $region36
        $region35: #{run_conv_block4_mag.1} parent=11 // pred_region
          %s457 = ssub.s32 512, 512
          %458 = vsyncadd [#allocation11], %s457
          %s459 = sshll.u32 [#allocation10], 4
          %s460 = int_to_ptr.vmem [resolvable:$true] %s459
          %465 = dma.hbm_to_vmem [thread:$0]  %s5, 512, %s460, [#allocation11], 128, 128, 8
        $region36: #{run_conv_block4_mag.1} parent=11 // pred_fallthru
          _
        // Predicated region
        $region37: #{run_conv_block4_mag.1} parent=11 // pred_check
          %p466 = pneg %p200
        $region38: #{run_conv_block4_mag.1} parent=11 // pred_check_branch
          %468 = sbr.rel (%p466) target = $region40
        $region39: #{run_conv_block4_mag.1} parent=11 // pred_region
          %s470 = ssub.s32 1024, 1024
          %471 = vsyncadd [#allocation11], %s470
          %s472 = sshll.u32 [#allocation12], 4
          %s473 = int_to_ptr.vmem [resolvable:$true] %s472
          %478 = dma.hbm_to_vmem [thread:$0]  %s7, 1024, %s473, [#allocation11], 128, 128, 8
        $region40: #{run_conv_block4_mag.1} parent=11 // pred_fallthru
          _
        // Predicated region
        $region41: #{run_conv_block4_mag.1} parent=11 // pred_check
          %p479 = pneg %p221
        $region42: #{run_conv_block4_mag.1} parent=11 // pred_check_branch
          %481 = sbr.rel (%p479) target = $region44
        $region43: #{run_conv_block4_mag.1} parent=11 // pred_region
          %s483 = ssub.s32 1024, 1024
          %484 = vsyncadd [#allocation14], %s483
          %s485 = sshll.u32 [#allocation13], 4
          %s486 = int_to_ptr.vmem [resolvable:$true] %s485
          %491 = dma.hbm_to_vmem [thread:$0]  %s8, 1024, %s486, [#allocation14], 128, 128, 8
        $region44: #{run_conv_block4_mag.1} parent=11 // pred_fallthru
          _
        // Predicated region
        $region45: #{run_conv_block4_mag.1} parent=11 // pred_check
          %p492 = pneg %p242
        $region46: #{run_conv_block4_mag.1} parent=11 // pred_check_branch
          %494 = sbr.rel (%p492) target = $region48
        $region47: #{run_conv_block4_mag.1} parent=11 // pred_region
          %s496 = ssub.s32 1024, 1024
          %497 = vsyncadd [#allocation14], %s496
          %s498 = sshll.u32 [#allocation15], 4
          %s499 = int_to_ptr.vmem [resolvable:$true] %s498
          %504 = dma.hbm_to_vmem [thread:$0]  %s9, 1024, %s499, [#allocation14], 128, 128, 8
        $region48: #{run_conv_block4_mag.1} parent=11 // pred_fallthru
          _
        // Predicated region
        $region49: #{run_conv_block4_mag.1} parent=11 // pred_check
          %p505 = pneg %p263
        $region50: #{run_conv_block4_mag.1} parent=11 // pred_check_branch
          %507 = sbr.rel (%p505) target = $region52
        $region51: #{run_conv_block4_mag.1} parent=11 // pred_region
          _
        $region52: #{run_conv_block4_mag.1} parent=11 // pred_fallthru
          _
        // Predicated region
        $region53: #{run_conv_block4_mag.1} parent=11 // pred_check
          %p508 = pneg %p284
        $region54: #{run_conv_block4_mag.1} parent=11 // pred_check_branch
          %510 = sbr.rel (%p508) target = $region56
        $region55: #{run_conv_block4_mag.1} parent=11 // pred_region
          _
        $region56: #{run_conv_block4_mag.1} parent=11 // pred_fallthru
          _
        // Predicated region
        $region57: #{run_conv_block4_mag.1} parent=11 // pred_check
          %p511 = pneg %p305
        $region58: #{run_conv_block4_mag.1} parent=11 // pred_check_branch
          %513 = sbr.rel (%p511) target = $region60
        $region59: #{run_conv_block4_mag.1} parent=11 // pred_region
          _
        $region60: #{run_conv_block4_mag.1} parent=11 // pred_fallthru
          _
        // Predicated region
        $region61: #{run_conv_block4_mag.1} parent=11 // pred_check
          %p514 = pneg %p326
        $region62: #{run_conv_block4_mag.1} parent=11 // pred_check_branch
          %516 = sbr.rel (%p514) target = $region64
        $region63: #{run_conv_block4_mag.1} parent=11 // pred_region
          %s518 = ssub.s32 2048, 2048
          %519 = vsyncadd [#allocation17], %s518
          %s520 = sshll.u32 [#allocation16], 4
          %s521 = int_to_ptr.vmem [resolvable:$true] %s520
          %526 = dma.hbm_to_vmem [thread:$0]  %s13, 2048, %s521, [#allocation17], 128, 128, 8
        $region64: #{run_conv_block4_mag.1} parent=11 // pred_fallthru
          _
        // Predicated region
        $region65: #{run_conv_block4_mag.1} parent=11 // pred_check
          %p527 = pneg %p347
        $region66: #{run_conv_block4_mag.1} parent=11 // pred_check_branch
          %529 = sbr.rel (%p527) target = $region68
        $region67: #{run_conv_block4_mag.1} parent=11 // pred_region
          %s531 = ssub.s32 512, 512
          %532 = vsyncadd [#allocation17], %s531
          %s533 = sshll.u32 [#allocation18], 4
          %s534 = int_to_ptr.vmem [resolvable:$true] %s533
          %539 = dma.hbm_to_vmem [thread:$0]  %s14, 512, %s534, [#allocation17], 128, 128, 8
        $region68: #{run_conv_block4_mag.1} parent=11 // pred_fallthru
          _
      $region12: #{run_conv_block4_mag.1} parent=5 // pred_fallthru
        _
      %p540 = scmp.lt.s32.totalorder %s27, 2
      // Predicated region
      $region69: #{run_conv_block4_mag.1} parent=5 // pred_check
        %p541 = pneg %p540
      $region70: #{run_conv_block4_mag.1} parent=5 // pred_check_branch
        %543 = sbr.rel (%p541) target = $region72
      $region71: #{run_conv_block4_mag.1} parent=5 // pred_region
        // Predicated region
        $region73: #{run_conv_block4_mag.1} parent=71 // pred_check
          %p544 = pneg %p173
        $region74: #{run_conv_block4_mag.1} parent=71 // pred_check_branch
          %546 = sbr.rel (%p544) target = $region76
        $region75: #{run_conv_block4_mag.1} parent=71 // pred_region
          %p547 = scmp.lt.s32.totalorder %s27, 1
          %s548 = scalar_select %p547, %s27, 1
          %s549 = smul.addr %s548, 8
          %s550 = smul.addr %s549, 8
          %s551 = scalar_lea.vmem %s6, %s550
        $region76: #{run_conv_block4_mag.1} parent=71 // pred_fallthru
          _
      $region72: #{run_conv_block4_mag.1} parent=5 // pred_fallthru
        _
      %p552 = scmp.le.s32.totalorder 1, %s27
      %p553 = scmp.lt.s32.totalorder %s27, 3
      %p554 = pnand %p552, %p553
      %p555 = pneg %p554
      // Predicated region
      $region77: #{run_conv_block4_mag.1} parent=5 // pred_check
        _
      $region78: #{run_conv_block4_mag.1} parent=5 // pred_check_branch
        %557 = sbr.rel (%p554) target = $region80
      $region79: #{run_conv_block4_mag.1} parent=5 // pred_region
        %s558 = ssub.s32 %s27, 1
        // Predicated region
        $region81: #{run_conv_block4_mag.1} parent=79 // pred_check
          %p559 = pneg %p48
        $region82: #{run_conv_block4_mag.1} parent=79 // pred_check_branch
          %561 = sbr.rel (%p559) target = $region84
        $region83: #{run_conv_block4_mag.1} parent=79 // pred_region
          %562 = dma.done [#allocation3], 512
        $region84: #{run_conv_block4_mag.1} parent=79 // pred_fallthru
          _
        // Predicated region
        $region85: #{run_conv_block4_mag.1} parent=79 // pred_check
          %p563 = pneg %p69
        $region86: #{run_conv_block4_mag.1} parent=79 // pred_check_branch
          %565 = sbr.rel (%p563) target = $region88
        $region87: #{run_conv_block4_mag.1} parent=79 // pred_region
          %566 = dma.done [#allocation5], 512
        $region88: #{run_conv_block4_mag.1} parent=79 // pred_fallthru
          _
        // Predicated region
        $region89: #{run_conv_block4_mag.1} parent=79 // pred_check
          %p567 = pneg %p90
        $region90: #{run_conv_block4_mag.1} parent=79 // pred_check_branch
          %569 = sbr.rel (%p567) target = $region92
        $region91: #{run_conv_block4_mag.1} parent=79 // pred_region
          %570 = dma.done [#allocation5], 512
        $region92: #{run_conv_block4_mag.1} parent=79 // pred_fallthru
          _
        // Predicated region
        $region93: #{run_conv_block4_mag.1} parent=79 // pred_check
          %p571 = pneg %p111
        $region94: #{run_conv_block4_mag.1} parent=79 // pred_check_branch
          %573 = sbr.rel (%p571) target = $region96
        $region95: #{run_conv_block4_mag.1} parent=79 // pred_region
          %574 = dma.done [#allocation8], 512
        $region96: #{run_conv_block4_mag.1} parent=79 // pred_fallthru
          _
        // Predicated region
        $region97: #{run_conv_block4_mag.1} parent=79 // pred_check
          %p575 = pneg %p132
        $region98: #{run_conv_block4_mag.1} parent=79 // pred_check_branch
          %577 = sbr.rel (%p575) target = $region100
        $region99: #{run_conv_block4_mag.1} parent=79 // pred_region
          %578 = dma.done [#allocation8], 512
        $region100: #{run_conv_block4_mag.1} parent=79 // pred_fallthru
          _
        // Predicated region
        $region101: #{run_conv_block4_mag.1} parent=79 // pred_check
          %p579 = pneg %p153
        $region102: #{run_conv_block4_mag.1} parent=79 // pred_check_branch
          %581 = sbr.rel (%p579) target = $region104
        $region103: #{run_conv_block4_mag.1} parent=79 // pred_region
          %582 = dma.done [#allocation11], 512
        $region104: #{run_conv_block4_mag.1} parent=79 // pred_fallthru
          _
        // Predicated region
        $region105: #{run_conv_block4_mag.1} parent=79 // pred_check
          %p583 = pneg %p200
        $region106: #{run_conv_block4_mag.1} parent=79 // pred_check_branch
          %585 = sbr.rel (%p583) target = $region108
        $region107: #{run_conv_block4_mag.1} parent=79 // pred_region
          %586 = dma.done [#allocation11], 1024
        $region108: #{run_conv_block4_mag.1} parent=79 // pred_fallthru
          _
        // Predicated region
        $region109: #{run_conv_block4_mag.1} parent=79 // pred_check
          %p587 = pneg %p221
        $region110: #{run_conv_block4_mag.1} parent=79 // pred_check_branch
          %589 = sbr.rel (%p587) target = $region112
        $region111: #{run_conv_block4_mag.1} parent=79 // pred_region
          %590 = dma.done [#allocation14], 1024
        $region112: #{run_conv_block4_mag.1} parent=79 // pred_fallthru
          _
        // Predicated region
        $region113: #{run_conv_block4_mag.1} parent=79 // pred_check
          %p591 = pneg %p242
        $region114: #{run_conv_block4_mag.1} parent=79 // pred_check_branch
          %593 = sbr.rel (%p591) target = $region116
        $region115: #{run_conv_block4_mag.1} parent=79 // pred_region
          %594 = dma.done [#allocation14], 1024
        $region116: #{run_conv_block4_mag.1} parent=79 // pred_fallthru
          _
        // Predicated region
        $region117: #{run_conv_block4_mag.1} parent=79 // pred_check
          %p595 = pneg %p326
        $region118: #{run_conv_block4_mag.1} parent=79 // pred_check_branch
          %597 = sbr.rel (%p595) target = $region120
        $region119: #{run_conv_block4_mag.1} parent=79 // pred_region
          %598 = dma.done [#allocation17], 2048
        $region120: #{run_conv_block4_mag.1} parent=79 // pred_fallthru
          _
        // Predicated region
        $region121: #{run_conv_block4_mag.1} parent=79 // pred_check
          %p599 = pneg %p347
        $region122: #{run_conv_block4_mag.1} parent=79 // pred_check_branch
          %601 = sbr.rel (%p599) target = $region124
        $region123: #{run_conv_block4_mag.1} parent=79 // pred_region
          %602 = dma.done [#allocation17], 512
        $region124: #{run_conv_block4_mag.1} parent=79 // pred_fallthru
          _
        %p603 = pneg %p48
        %p604 = pneg %p45
        %p605 = pneg %p69
        %p606 = pneg %p66
        %p607 = pneg %p90
        %p608 = pneg %p87
        %p609 = pneg %p111
        %p610 = pneg %p108
        %p611 = pneg %p132
        %p612 = pneg %p129
        %p613 = pneg %p153
        %p614 = pneg %p150
        %p615 = scmp.lt.s32.totalorder %s32, 1
        %s616 = scalar_select %p615, %s32, 1
        %s617 = smul.addr %s616, 8
        %s618 = smul.addr %s617, 8
        %s619 = scalar_lea.vmem %s6, %s618
        %p620 = pneg %p179
        %p621 = pneg %p176
        %p622 = pneg %p200
        %p623 = pneg %p197
        %p624 = pneg %p221
        %p625 = pneg %p218
        %p626 = pneg %p242
        %p627 = pneg %p239
        %p628 = pneg %p263
        %p629 = pneg %p260
        %p630 = pneg %p284
        %p631 = pneg %p281
        %p632 = pneg %p305
        %p633 = pneg %p302
        %p634 = pneg %p326
        %p635 = pneg %p323
        %p636 = pneg %p347
        %p637 = pneg %p344
        %p638 = pneg %p373
        %p639 = pneg %p370
        %p640 = scmp.lt.s32.totalorder %s32, 1
        %s641 = scalar_select %p640, %s32, 1
        %s642 = smul.addr %s641, 4
        %s643 = smul.addr %s642, 8
        %s644 = scalar_lea.vmem %s15, %s643
        %p645 = scmp.lt.s32.totalorder %s32, 1
        %s646 = scalar_select %p645, %s32, 1
        %s647 = smul.addr %s646, 8
        %s648 = smul.addr %s647, 8
        %s649 = scalar_lea.vmem %s6, %s648
        %p650 = scmp.lt.s32.totalorder %s32, 1
        %s651 = scalar_select %p650, %s32, 1
        %s652 = smul.addr %s651, 4
        %s653 = smul.addr %s652, 8
        %s654 = scalar_lea.vmem %s15, %s653
        %v655 = vld [vmem:[%s649] sm:$0xff]
        %v656 = vld [vmem:[%s649 + $0x8] sm:$0xff]
        %v657 = vld [vmem:[%s649 + $0x10] sm:$0xff]
        %v658 = vld [vmem:[%s649 + $0x18] sm:$0xff]
        %v659 = vld [vmem:[%s649 + $0x20] sm:$0xff]
        %v660 = vld [vmem:[%s649 + $0x28] sm:$0xff]
        %v661 = vld [vmem:[%s649 + $0x30] sm:$0xff]
        %v662 = vld [vmem:[%s649 + $0x38] sm:$0xff]
        %v663 = vld [vmem:[#allocation2] sm:$0xff]
        %v664 = vld [vmem:[#allocation2 + $0x8] sm:$0xff]
        %v665 = vld [vmem:[#allocation2 + $0x10] sm:$0xff]
        %v666 = vld [vmem:[#allocation2 + $0x18] sm:$0xff]
        %vm667 = vcmask 523264
        %v669 = vsel %vm667, %v663, 0
        %v672 = vsel %vm667, %v664, 0
        %v675 = vsel %vm667, %v665, 0
        %v678 = vsel %vm667, %v666, 0
        %680 = vmatprep.subr.mxu0 0.0
        %681 = vmatpush1.msra.mxu0 %v655
        %682 = vmatprep.subr.mxu0 0.0
        %683 = vmatpush1.msra.mxu0 %v656
        %684 = vmatprep.subr.mxu0 0.0
        %685 = vmatpush1.msra.mxu0 %v657
        %686 = vmatprep.subr.mxu0 0.0
        %687 = vmatpush1.msra.mxu0 %v658
        %688 = vmatprep.subr.mxu0 0.0
        %689 = vmatpush1.msra.mxu0 %v659
        %690 = vmatprep.subr.mxu0 0.0
        %691 = vmatpush1.msra.mxu0 %v660
        %692 = vmatprep.subr.mxu0 0.0
        %693 = vmatpush1.msra.mxu0 %v661
        %694 = vmatprep.subr.mxu0 0.0
        %695 = vmatpush1.msra.mxu0 %v662
        %696 = vmatprep.subr.mxu0 0.0
        %697 = vmatpush1.msra.mxu0 0.0
        %698 = vmatprep.subr.mxu0 0.0
        %699 = vmatpush1.msra.mxu0 0.0
        %700 = vmatprep.subr.mxu0 0.0
        %701 = vmatpush1.msra.mxu0 0.0
        %702 = vmatprep.subr.mxu0 0.0
        %703 = vmatpush1.msra.mxu0 0.0
        %704 = vmatprep.subr.mxu0 0.0
        %705 = vmatpush1.msra.mxu0 0.0
        %706 = vmatprep.subr.mxu0 0.0
        %707 = vmatpush1.msra.mxu0 0.0
        %708 = vmatprep.subr.mxu0 0.0
        %709 = vmatpush1.msra.mxu0 0.0
        %710 = vmatprep.subr.mxu0 0.0
        %711 = vmatpush1.msra.mxu0 0.0
        %712 = vmatprep.subr.mxu0 0.0
        %713 = vmatpush1.msra.mxu0 0.0
        %714 = vmatprep.subr.mxu0 0.0
        %715 = vmatpush1.msra.mxu0 0.0
        %716 = vmatprep.subr.mxu0 0.0
        %717 = vmatpush1.msra.mxu0 0.0
        %718 = vmatprep.subr.mxu0 0.0
        %719 = vmatpush1.msra.mxu0 0.0
        %720 = vmatprep.subr.mxu0 0.0
        %721 = vmatpush1.msra.mxu0 0.0
        %722 = vmatprep.subr.mxu0 0.0
        %723 = vmatpush1.msra.mxu0 0.0
        %724 = vmatprep.subr.mxu0 0.0
        %725 = vmatpush1.msra.mxu0 0.0
        %726 = vmatprep.subr.mxu0 0.0
        %727 = vmatpush1.msra.mxu0 0.0
        %728 = vmatprep.subr.mxu0 0.0
        %729 = vmatpush1.msra.mxu0 0.0
        %730 = vmatprep.subr.mxu0 0.0
        %731 = vmatpush1.msra.mxu0 0.0
        %732 = vmatprep.subr.mxu0 0.0
        %733 = vmatpush1.msra.mxu0 0.0
        %734 = vmatprep.subr.mxu0 0.0
        %735 = vmatpush1.msra.mxu0 0.0
        %736 = vmatprep.subr.mxu0 0.0
        %737 = vmatpush1.msra.mxu0 0.0
        %738 = vmatprep.subr.mxu0 0.0
        %739 = vmatpush1.msra.mxu0 0.0
        %740 = vmatprep.subr.mxu0 0.0
        %741 = vmatpush1.msra.mxu0 0.0
        %742 = vmatprep.subr.mxu0 0.0
        %743 = vmatpush1.msra.mxu0 0.0
        %744 = vmatprep.mubr.f32.mxu0 0.0
        %745 = vmatmul.mubr.f32.gmra.mrb[0].mxu0 %v669
        %v746 = vpop.f32.mrb[0].mxu0
        %v747 = vadd.f32 0.0, %v746
        %v748 = vpop.f32.mrb[0].mxu0
        %749 = vmatprep.mubr.f32.mxu0 0.0
        %750 = vmatmul.mubr.f32.gmra.mrb[0].mxu0 %v672
        %v751 = vpop.f32.mrb[0].mxu0
        %v752 = vadd.f32 0.0, %v751
        %v753 = vpop.f32.mrb[0].mxu0
        %754 = vmatprep.mubr.f32.mxu0 0.0
        %755 = vmatmul.mubr.f32.gmra.mrb[0].mxu0 %v675
        %v756 = vpop.f32.mrb[0].mxu0
        %v757 = vadd.f32 0.0, %v756
        %v758 = vpop.f32.mrb[0].mxu0
        %759 = vmatprep.mubr.f32.mxu0 0.0
        %760 = vmatmul.mubr.f32.gmra.mrb[0].mxu0 %v678
        %v761 = vpop.f32.mrb[0].mxu0
        %v762 = vadd.f32 0.0, %v761
        %v763 = vpop.f32.mrb[0].mxu0
        %764 = vdwg.mxu0
        %v765 = vld [vmem:[#allocation4] sm:$0xff]
        %v766 = vld [vmem:[#allocation4 + $0x8] sm:$0xff]
        %v767 = vld [vmem:[#allocation4 + $0x10] sm:$0xff]
        %v768 = vld [vmem:[#allocation4 + $0x18] sm:$0xff]
        %v770 = vsel %vm667, %v765, 0
        %v773 = vsel %vm667, %v766, 0
        %v776 = vsel %vm667, %v767, 0
        %v779 = vsel %vm667, %v768, 0
        %781 = vmatprep.subr.mxu0 0.0
        %782 = vmatpush1.msra.mxu0 %v655
        %783 = vmatprep.subr.mxu0 0.0
        %784 = vmatpush1.msra.mxu0 %v656
        %785 = vmatprep.subr.mxu0 0.0
        %786 = vmatpush1.msra.mxu0 %v657
        %787 = vmatprep.subr.mxu0 0.0
        %788 = vmatpush1.msra.mxu0 %v658
        %789 = vmatprep.subr.mxu0 0.0
        %790 = vmatpush1.msra.mxu0 %v659
        %791 = vmatprep.subr.mxu0 0.0
        %792 = vmatpush1.msra.mxu0 %v660
        %793 = vmatprep.subr.mxu0 0.0
        %794 = vmatpush1.msra.mxu0 %v661
        %795 = vmatprep.subr.mxu0 0.0
        %796 = vmatpush1.msra.mxu0 %v662
        %797 = vmatprep.subr.mxu0 0.0
        %798 = vmatpush1.msra.mxu0 0.0
        %799 = vmatprep.subr.mxu0 0.0
        %800 = vmatpush1.msra.mxu0 0.0
        %801 = vmatprep.subr.mxu0 0.0
        %802 = vmatpush1.msra.mxu0 0.0
        %803 = vmatprep.subr.mxu0 0.0
        %804 = vmatpush1.msra.mxu0 0.0
        %805 = vmatprep.subr.mxu0 0.0
        %806 = vmatpush1.msra.mxu0 0.0
        %807 = vmatprep.subr.mxu0 0.0
        %808 = vmatpush1.msra.mxu0 0.0
        %809 = vmatprep.subr.mxu0 0.0
        %810 = vmatpush1.msra.mxu0 0.0
        %811 = vmatprep.subr.mxu0 0.0
        %812 = vmatpush1.msra.mxu0 0.0
        %813 = vmatprep.subr.mxu0 0.0
        %814 = vmatpush1.msra.mxu0 0.0
        %815 = vmatprep.subr.mxu0 0.0
        %816 = vmatpush1.msra.mxu0 0.0
        %817 = vmatprep.subr.mxu0 0.0
        %818 = vmatpush1.msra.mxu0 0.0
        %819 = vmatprep.subr.mxu0 0.0
        %820 = vmatpush1.msra.mxu0 0.0
        %821 = vmatprep.subr.mxu0 0.0
        %822 = vmatpush1.msra.mxu0 0.0
        %823 = vmatprep.subr.mxu0 0.0
        %824 = vmatpush1.msra.mxu0 0.0
        %825 = vmatprep.subr.mxu0 0.0
        %826 = vmatpush1.msra.mxu0 0.0
        %827 = vmatprep.subr.mxu0 0.0
        %828 = vmatpush1.msra.mxu0 0.0
        %829 = vmatprep.subr.mxu0 0.0
        %830 = vmatpush1.msra.mxu0 0.0
        %831 = vmatprep.subr.mxu0 0.0
        %832 = vmatpush1.msra.mxu0 0.0
        %833 = vmatprep.subr.mxu0 0.0
        %834 = vmatpush1.msra.mxu0 0.0
        %835 = vmatprep.subr.mxu0 0.0
        %836 = vmatpush1.msra.mxu0 0.0
        %837 = vmatprep.subr.mxu0 0.0
        %838 = vmatpush1.msra.mxu0 0.0
        %839 = vmatprep.subr.mxu0 0.0
        %840 = vmatpush1.msra.mxu0 0.0
        %841 = vmatprep.subr.mxu0 0.0
        %842 = vmatpush1.msra.mxu0 0.0
        %843 = vmatprep.subr.mxu0 0.0
        %844 = vmatpush1.msra.mxu0 0.0
        %845 = vmatprep.mubr.f32.mxu0 0.0
        %846 = vmatmul.mubr.f32.gmra.mrb[0].mxu0 %v770
        %v847 = vpop.f32.mrb[0].mxu0
        %v848 = vadd.f32 0.0, %v847
        %v849 = vpop.f32.mrb[0].mxu0
        %850 = vmatprep.mubr.f32.mxu0 0.0
        %851 = vmatmul.mubr.f32.gmra.mrb[0].mxu0 %v773
        %v852 = vpop.f32.mrb[0].mxu0
        %v853 = vadd.f32 0.0, %v852
        %v854 = vpop.f32.mrb[0].mxu0
        %855 = vmatprep.mubr.f32.mxu0 0.0
        %856 = vmatmul.mubr.f32.gmra.mrb[0].mxu0 %v776
        %v857 = vpop.f32.mrb[0].mxu0
        %v858 = vadd.f32 0.0, %v857
        %v859 = vpop.f32.mrb[0].mxu0
        %860 = vmatprep.mubr.f32.mxu0 0.0
        %861 = vmatmul.mubr.f32.gmra.mrb[0].mxu0 %v779
        %v862 = vpop.f32.mrb[0].mxu0
        %v863 = vadd.f32 0.0, %v862
        %v864 = vpop.f32.mrb[0].mxu0
        %865 = vdwg.mxu0
        %v866 = vld [vmem:[#allocation6] sm:$0xff]
        %v867 = vld [vmem:[#allocation6 + $0x8] sm:$0xff]
        %v868 = vld [vmem:[#allocation6 + $0x10] sm:$0xff]
        %v869 = vld [vmem:[#allocation6 + $0x18] sm:$0xff]
        %v871 = vsel %vm667, %v866, 0
        %v874 = vsel %vm667, %v867, 0
        %v877 = vsel %vm667, %v868, 0
        %v880 = vsel %vm667, %v869, 0
        %882 = vmatprep.subr.mxu0 0.0
        %883 = vmatpush1.msra.mxu0 %v655
        %884 = vmatprep.subr.mxu0 0.0
        %885 = vmatpush1.msra.mxu0 %v656
        %886 = vmatprep.subr.mxu0 0.0
        %887 = vmatpush1.msra.mxu0 %v657
        %888 = vmatprep.subr.mxu0 0.0
        %889 = vmatpush1.msra.mxu0 %v658
        %890 = vmatprep.subr.mxu0 0.0
        %891 = vmatpush1.msra.mxu0 %v659
        %892 = vmatprep.subr.mxu0 0.0
        %893 = vmatpush1.msra.mxu0 %v660
        %894 = vmatprep.subr.mxu0 0.0
        %895 = vmatpush1.msra.mxu0 %v661
        %896 = vmatprep.subr.mxu0 0.0
        %897 = vmatpush1.msra.mxu0 %v662
        %898 = vmatprep.subr.mxu0 0.0
        %899 = vmatpush1.msra.mxu0 0.0
        %900 = vmatprep.subr.mxu0 0.0
        %901 = vmatpush1.msra.mxu0 0.0
        %902 = vmatprep.subr.mxu0 0.0
        %903 = vmatpush1.msra.mxu0 0.0
        %904 = vmatprep.subr.mxu0 0.0
        %905 = vmatpush1.msra.mxu0 0.0
        %906 = vmatprep.subr.mxu0 0.0
        %907 = vmatpush1.msra.mxu0 0.0
        %908 = vmatprep.subr.mxu0 0.0
        %909 = vmatpush1.msra.mxu0 0.0
        %910 = vmatprep.subr.mxu0 0.0
        %911 = vmatpush1.msra.mxu0 0.0
        %912 = vmatprep.subr.mxu0 0.0
        %913 = vmatpush1.msra.mxu0 0.0
        %914 = vmatprep.subr.mxu0 0.0
        %915 = vmatpush1.msra.mxu0 0.0
        %916 = vmatprep.subr.mxu0 0.0
        %917 = vmatpush1.msra.mxu0 0.0
        %918 = vmatprep.subr.mxu0 0.0
        %919 = vmatpush1.msra.mxu0 0.0
        %920 = vmatprep.subr.mxu0 0.0
        %921 = vmatpush1.msra.mxu0 0.0
        %922 = vmatprep.subr.mxu0 0.0
        %923 = vmatpush1.msra.mxu0 0.0
        %924 = vmatprep.subr.mxu0 0.0
        %925 = vmatpush1.msra.mxu0 0.0
        %926 = vmatprep.subr.mxu0 0.0
        %927 = vmatpush1.msra.mxu0 0.0
        %928 = vmatprep.subr.mxu0 0.0
        %929 = vmatpush1.msra.mxu0 0.0
        %930 = vmatprep.subr.mxu0 0.0
        %931 = vmatpush1.msra.mxu0 0.0
        %932 = vmatprep.subr.mxu0 0.0
        %933 = vmatpush1.msra.mxu0 0.0
        %934 = vmatprep.subr.mxu0 0.0
        %935 = vmatpush1.msra.mxu0 0.0
        %936 = vmatprep.subr.mxu0 0.0
        %937 = vmatpush1.msra.mxu0 0.0
        %938 = vmatprep.subr.mxu0 0.0
        %939 = vmatpush1.msra.mxu0 0.0
        %940 = vmatprep.subr.mxu0 0.0
        %941 = vmatpush1.msra.mxu0 0.0
        %942 = vmatprep.subr.mxu0 0.0
        %943 = vmatpush1.msra.mxu0 0.0
        %944 = vmatprep.subr.mxu0 0.0
        %945 = vmatpush1.msra.mxu0 0.0
        %946 = vmatprep.mubr.f32.mxu0 0.0
        %947 = vmatmul.mubr.f32.gmra.mrb[0].mxu0 %v871
        %v948 = vpop.f32.mrb[0].mxu0
        %v949 = vadd.f32 0.0, %v948
        %v950 = vpop.f32.mrb[0].mxu0
        %951 = vmatprep.mubr.f32.mxu0 0.0
        %952 = vmatmul.mubr.f32.gmra.mrb[0].mxu0 %v874
        %v953 = vpop.f32.mrb[0].mxu0
        %v954 = vadd.f32 0.0, %v953
        %v955 = vpop.f32.mrb[0].mxu0
        %956 = vmatprep.mubr.f32.mxu0 0.0
        %957 = vmatmul.mubr.f32.gmra.mrb[0].mxu0 %v877
        %v958 = vpop.f32.mrb[0].mxu0
        %v959 = vadd.f32 0.0, %v958
        %v960 = vpop.f32.mrb[0].mxu0
        %961 = vmatprep.mubr.f32.mxu0 0.0
        %962 = vmatmul.mubr.f32.gmra.mrb[0].mxu0 %v880
        %v963 = vpop.f32.mrb[0].mxu0
        %v964 = vadd.f32 0.0, %v963
        %v965 = vpop.f32.mrb[0].mxu0
        %966 = vdwg.mxu0
        %v967 = vld [vmem:[#allocation12] sm:$0xff]
        %v968 = vld [vmem:[#allocation12 + $0x8] sm:$0xff]
        %v969 = vld [vmem:[#allocation12 + $0x10] sm:$0xff]
        %v970 = vld [vmem:[#allocation12 + $0x18] sm:$0xff]
        %v971 = vld [vmem:[#allocation12 + $0x20] sm:$0xff]
        %v972 = vld [vmem:[#allocation12 + $0x28] sm:$0xff]
        %v973 = vld [vmem:[#allocation12 + $0x30] sm:$0xff]
        %v974 = vld [vmem:[#allocation12 + $0x38] sm:$0xff]
        %v975 = vld [vmem:[#allocation13] sm:$0xff]
        %v976 = vld [vmem:[#allocation13 + $0x8] sm:$0xff]
        %v977 = vld [vmem:[#allocation13 + $0x10] sm:$0xff]
        %v978 = vld [vmem:[#allocation13 + $0x18] sm:$0xff]
        %v979 = vld [vmem:[#allocation13 + $0x20] sm:$0xff]
        %v980 = vld [vmem:[#allocation13 + $0x28] sm:$0xff]
        %v981 = vld [vmem:[#allocation13 + $0x30] sm:$0xff]
        %v982 = vld [vmem:[#allocation13 + $0x38] sm:$0xff]
        %v984 = vsel %vm667, %v848, 0
        %v987 = vsel %vm667, %v853, 0
        %v990 = vsel %vm667, %v858, 0
        %v993 = vsel %vm667, %v863, 0
        %995 = vmatprep.subr.mxu0 0.0
        %996 = vmatpush1.msra.mxu0 %v975
        %997 = vmatprep.subr.mxu0 0.0
        %998 = vmatpush1.msra.mxu0 %v976
        %999 = vmatprep.subr.mxu0 0.0
        %1000 = vmatpush1.msra.mxu0 %v977
        %1001 = vmatprep.subr.mxu0 0.0
        %1002 = vmatpush1.msra.mxu0 %v978
        %1003 = vmatprep.subr.mxu0 0.0
        %1004 = vmatpush1.msra.mxu0 %v979
        %1005 = vmatprep.subr.mxu0 0.0
        %1006 = vmatpush1.msra.mxu0 %v980
        %1007 = vmatprep.subr.mxu0 0.0
        %1008 = vmatpush1.msra.mxu0 %v981
        %1009 = vmatprep.subr.mxu0 0.0
        %1010 = vmatpush1.msra.mxu0 %v982
        %1011 = vmatprep.subr.mxu0 0.0
        %1012 = vmatpush1.msra.mxu0 0.0
        %1013 = vmatprep.subr.mxu0 0.0
        %1014 = vmatpush1.msra.mxu0 0.0
        %1015 = vmatprep.subr.mxu0 0.0
        %1016 = vmatpush1.msra.mxu0 0.0
        %1017 = vmatprep.subr.mxu0 0.0
        %1018 = vmatpush1.msra.mxu0 0.0
        %1019 = vmatprep.subr.mxu0 0.0
        %1020 = vmatpush1.msra.mxu0 0.0
        %1021 = vmatprep.subr.mxu0 0.0
        %1022 = vmatpush1.msra.mxu0 0.0
        %1023 = vmatprep.subr.mxu0 0.0
        %1024 = vmatpush1.msra.mxu0 0.0
        %1025 = vmatprep.subr.mxu0 0.0
        %1026 = vmatpush1.msra.mxu0 0.0
        %1027 = vmatprep.subr.mxu0 0.0
        %1028 = vmatpush1.msra.mxu0 0.0
        %1029 = vmatprep.subr.mxu0 0.0
        %1030 = vmatpush1.msra.mxu0 0.0
        %1031 = vmatprep.subr.mxu0 0.0
        %1032 = vmatpush1.msra.mxu0 0.0
        %1033 = vmatprep.subr.mxu0 0.0
        %1034 = vmatpush1.msra.mxu0 0.0
        %1035 = vmatprep.subr.mxu0 0.0
        %1036 = vmatpush1.msra.mxu0 0.0
        %1037 = vmatprep.subr.mxu0 0.0
        %1038 = vmatpush1.msra.mxu0 0.0
        %1039 = vmatprep.subr.mxu0 0.0
        %1040 = vmatpush1.msra.mxu0 0.0
        %1041 = vmatprep.subr.mxu0 0.0
        %1042 = vmatpush1.msra.mxu0 0.0
        %1043 = vmatprep.subr.mxu0 0.0
        %1044 = vmatpush1.msra.mxu0 0.0
        %1045 = vmatprep.subr.mxu0 0.0
        %1046 = vmatpush1.msra.mxu0 0.0
        %1047 = vmatprep.subr.mxu0 0.0
        %1048 = vmatpush1.msra.mxu0 0.0
        %1049 = vmatprep.subr.mxu0 0.0
        %1050 = vmatpush1.msra.mxu0 0.0
        %1051 = vmatprep.subr.mxu0 0.0
        %1052 = vmatpush1.msra.mxu0 0.0
        %1053 = vmatprep.subr.mxu0 0.0
        %1054 = vmatpush1.msra.mxu0 0.0
        %1055 = vmatprep.subr.mxu0 0.0
        %1056 = vmatpush1.msra.mxu0 0.0
        %1057 = vmatprep.subr.mxu0 0.0
        %1058 = vmatpush1.msra.mxu0 0.0
        %1059 = vmatprep.mubr.f32.mxu0 0.0
        %1060 = vmatmul.mubr.f32.gmra.mrb[0].mxu0 %v984
        %v1061 = vpop.f32.mrb[0].mxu0
        %v1062 = vadd.f32 0.0, %v1061
        %v1063 = vpop.f32.mrb[0].mxu0
        %1064 = vmatprep.mubr.f32.mxu0 0.0
        %1065 = vmatmul.mubr.f32.gmra.mrb[0].mxu0 %v987
        %v1066 = vpop.f32.mrb[0].mxu0
        %v1067 = vadd.f32 0.0, %v1066
        %v1068 = vpop.f32.mrb[0].mxu0
        %1069 = vmatprep.mubr.f32.mxu0 0.0
        %1070 = vmatmul.mubr.f32.gmra.mrb[0].mxu0 %v990
        %v1071 = vpop.f32.mrb[0].mxu0
        %v1072 = vadd.f32 0.0, %v1071
        %v1073 = vpop.f32.mrb[0].mxu0
        %1074 = vmatprep.mubr.f32.mxu0 0.0
        %1075 = vmatmul.mubr.f32.gmra.mrb[0].mxu0 %v993
        %v1076 = vpop.f32.mrb[0].mxu0
        %v1077 = vadd.f32 0.0, %v1076
        %v1078 = vpop.f32.mrb[0].mxu0
        %1079 = vdwg.mxu0
        %v1081 = vsel %vm667, %v747, 0
        %v1084 = vsel %vm667, %v752, 0
        %v1087 = vsel %vm667, %v757, 0
        %v1090 = vsel %vm667, %v762, 0
        %1092 = vmatprep.subr.mxu0 0.0
        %1093 = vmatpush1.msra.mxu0 %v967
        %1094 = vmatprep.subr.mxu0 0.0
        %1095 = vmatpush1.msra.mxu0 %v968
        %1096 = vmatprep.subr.mxu0 0.0
        %1097 = vmatpush1.msra.mxu0 %v969
        %1098 = vmatprep.subr.mxu0 0.0
        %1099 = vmatpush1.msra.mxu0 %v970
        %1100 = vmatprep.subr.mxu0 0.0
        %1101 = vmatpush1.msra.mxu0 %v971
        %1102 = vmatprep.subr.mxu0 0.0
        %1103 = vmatpush1.msra.mxu0 %v972
        %1104 = vmatprep.subr.mxu0 0.0
        %1105 = vmatpush1.msra.mxu0 %v973
        %1106 = vmatprep.subr.mxu0 0.0
        %1107 = vmatpush1.msra.mxu0 %v974
        %1108 = vmatprep.subr.mxu0 0.0
        %1109 = vmatpush1.msra.mxu0 0.0
        %1110 = vmatprep.subr.mxu0 0.0
        %1111 = vmatpush1.msra.mxu0 0.0
        %1112 = vmatprep.subr.mxu0 0.0
        %1113 = vmatpush1.msra.mxu0 0.0
        %1114 = vmatprep.subr.mxu0 0.0
        %1115 = vmatpush1.msra.mxu0 0.0
        %1116 = vmatprep.subr.mxu0 0.0
        %1117 = vmatpush1.msra.mxu0 0.0
        %1118 = vmatprep.subr.mxu0 0.0
        %1119 = vmatpush1.msra.mxu0 0.0
        %1120 = vmatprep.subr.mxu0 0.0
        %1121 = vmatpush1.msra.mxu0 0.0
        %1122 = vmatprep.subr.mxu0 0.0
        %1123 = vmatpush1.msra.mxu0 0.0
        %1124 = vmatprep.subr.mxu0 0.0
        %1125 = vmatpush1.msra.mxu0 0.0
        %1126 = vmatprep.subr.mxu0 0.0
        %1127 = vmatpush1.msra.mxu0 0.0
        %1128 = vmatprep.subr.mxu0 0.0
        %1129 = vmatpush1.msra.mxu0 0.0
        %1130 = vmatprep.subr.mxu0 0.0
        %1131 = vmatpush1.msra.mxu0 0.0
        %1132 = vmatprep.subr.mxu0 0.0
        %1133 = vmatpush1.msra.mxu0 0.0
        %1134 = vmatprep.subr.mxu0 0.0
        %1135 = vmatpush1.msra.mxu0 0.0
        %1136 = vmatprep.subr.mxu0 0.0
        %1137 = vmatpush1.msra.mxu0 0.0
        %1138 = vmatprep.subr.mxu0 0.0
        %1139 = vmatpush1.msra.mxu0 0.0
        %1140 = vmatprep.subr.mxu0 0.0
        %1141 = vmatpush1.msra.mxu0 0.0
        %1142 = vmatprep.subr.mxu0 0.0
        %1143 = vmatpush1.msra.mxu0 0.0
        %1144 = vmatprep.subr.mxu0 0.0
        %1145 = vmatpush1.msra.mxu0 0.0
        %1146 = vmatprep.subr.mxu0 0.0
        %1147 = vmatpush1.msra.mxu0 0.0
        %1148 = vmatprep.subr.mxu0 0.0
        %1149 = vmatpush1.msra.mxu0 0.0
        %1150 = vmatprep.subr.mxu0 0.0
        %1151 = vmatpush1.msra.mxu0 0.0
        %1152 = vmatprep.subr.mxu0 0.0
        %1153 = vmatpush1.msra.mxu0 0.0
        %1154 = vmatprep.subr.mxu0 0.0
        %1155 = vmatpush1.msra.mxu0 0.0
        %1156 = vmatprep.mubr.f32.mxu0 0.0
        %1157 = vmatmul.mubr.f32.gmra.mrb[0].mxu0 %v1081
        %v1158 = vpop.f32.mrb[0].mxu0
        %v1159 = vadd.f32 %v1062, %v1158
        %v1160 = vpop.f32.mrb[0].mxu0
        %1161 = vmatprep.mubr.f32.mxu0 0.0
        %1162 = vmatmul.mubr.f32.gmra.mrb[0].mxu0 %v1084
        %v1163 = vpop.f32.mrb[0].mxu0
        %v1164 = vadd.f32 %v1067, %v1163
        %v1165 = vpop.f32.mrb[0].mxu0
        %1166 = vmatprep.mubr.f32.mxu0 0.0
        %1167 = vmatmul.mubr.f32.gmra.mrb[0].mxu0 %v1087
        %v1168 = vpop.f32.mrb[0].mxu0
        %v1169 = vadd.f32 %v1072, %v1168
        %v1170 = vpop.f32.mrb[0].mxu0
        %1171 = vmatprep.mubr.f32.mxu0 0.0
        %1172 = vmatmul.mubr.f32.gmra.mrb[0].mxu0 %v1090
        %v1173 = vpop.f32.mrb[0].mxu0
        %v1174 = vadd.f32 %v1077, %v1173
        %v1175 = vpop.f32.mrb[0].mxu0
        %1176 = vdwg.mxu0
        %v1177 = vld [vmem:[#allocation15] sm:$0xff]
        %v1178 = vld [vmem:[#allocation15 + $0x8] sm:$0xff]
        %v1179 = vld [vmem:[#allocation15 + $0x10] sm:$0xff]
        %v1180 = vld [vmem:[#allocation15 + $0x18] sm:$0xff]
        %v1181 = vld [vmem:[#allocation15 + $0x20] sm:$0xff]
        %v1182 = vld [vmem:[#allocation15 + $0x28] sm:$0xff]
        %v1183 = vld [vmem:[#allocation15 + $0x30] sm:$0xff]
        %v1184 = vld [vmem:[#allocation15 + $0x38] sm:$0xff]
        %v1186 = vsel %vm667, %v949, 0
        %v1189 = vsel %vm667, %v954, 0
        %v1192 = vsel %vm667, %v959, 0
        %v1195 = vsel %vm667, %v964, 0
        %1197 = vmatprep.subr.mxu0 0.0
        %1198 = vmatpush1.msra.mxu0 %v1177
        %1199 = vmatprep.subr.mxu0 0.0
        %1200 = vmatpush1.msra.mxu0 %v1178
        %1201 = vmatprep.subr.mxu0 0.0
        %1202 = vmatpush1.msra.mxu0 %v1179
        %1203 = vmatprep.subr.mxu0 0.0
        %1204 = vmatpush1.msra.mxu0 %v1180
        %1205 = vmatprep.subr.mxu0 0.0
        %1206 = vmatpush1.msra.mxu0 %v1181
        %1207 = vmatprep.subr.mxu0 0.0
        %1208 = vmatpush1.msra.mxu0 %v1182
        %1209 = vmatprep.subr.mxu0 0.0
        %1210 = vmatpush1.msra.mxu0 %v1183
        %1211 = vmatprep.subr.mxu0 0.0
        %1212 = vmatpush1.msra.mxu0 %v1184
        %1213 = vmatprep.subr.mxu0 0.0
        %1214 = vmatpush1.msra.mxu0 0.0
        %1215 = vmatprep.subr.mxu0 0.0
        %1216 = vmatpush1.msra.mxu0 0.0
        %1217 = vmatprep.subr.mxu0 0.0
        %1218 = vmatpush1.msra.mxu0 0.0
        %1219 = vmatprep.subr.mxu0 0.0
        %1220 = vmatpush1.msra.mxu0 0.0
        %1221 = vmatprep.subr.mxu0 0.0
        %1222 = vmatpush1.msra.mxu0 0.0
        %1223 = vmatprep.subr.mxu0 0.0
        %1224 = vmatpush1.msra.mxu0 0.0
        %1225 = vmatprep.subr.mxu0 0.0
        %1226 = vmatpush1.msra.mxu0 0.0
        %1227 = vmatprep.subr.mxu0 0.0
        %1228 = vmatpush1.msra.mxu0 0.0
        %1229 = vmatprep.subr.mxu0 0.0
        %1230 = vmatpush1.msra.mxu0 0.0
        %1231 = vmatprep.subr.mxu0 0.0
        %1232 = vmatpush1.msra.mxu0 0.0
        %1233 = vmatprep.subr.mxu0 0.0
        %1234 = vmatpush1.msra.mxu0 0.0
        %1235 = vmatprep.subr.mxu0 0.0
        %1236 = vmatpush1.msra.mxu0 0.0
        %1237 = vmatprep.subr.mxu0 0.0
        %1238 = vmatpush1.msra.mxu0 0.0
        %1239 = vmatprep.subr.mxu0 0.0
        %1240 = vmatpush1.msra.mxu0 0.0
        %1241 = vmatprep.subr.mxu0 0.0
        %1242 = vmatpush1.msra.mxu0 0.0
        %1243 = vmatprep.subr.mxu0 0.0
        %1244 = vmatpush1.msra.mxu0 0.0
        %1245 = vmatprep.subr.mxu0 0.0
        %1246 = vmatpush1.msra.mxu0 0.0
        %1247 = vmatprep.subr.mxu0 0.0
        %1248 = vmatpush1.msra.mxu0 0.0
        %1249 = vmatprep.subr.mxu0 0.0
        %1250 = vmatpush1.msra.mxu0 0.0
        %1251 = vmatprep.subr.mxu0 0.0
        %1252 = vmatpush1.msra.mxu0 0.0
        %1253 = vmatprep.subr.mxu0 0.0
        %1254 = vmatpush1.msra.mxu0 0.0
        %1255 = vmatprep.subr.mxu0 0.0
        %1256 = vmatpush1.msra.mxu0 0.0
        %1257 = vmatprep.subr.mxu0 0.0
        %1258 = vmatpush1.msra.mxu0 0.0
        %1259 = vmatprep.subr.mxu0 0.0
        %1260 = vmatpush1.msra.mxu0 0.0
        %1261 = vmatprep.mubr.f32.mxu0 0.0
        %1262 = vmatmul.mubr.f32.gmra.mrb[0].mxu0 %v1186
        %v1263 = vpop.f32.mrb[0].mxu0
        %v1264 = vadd.f32 0.0, %v1263
        %v1265 = vpop.f32.mrb[0].mxu0
        %1266 = vmatprep.mubr.f32.mxu0 0.0
        %1267 = vmatmul.mubr.f32.gmra.mrb[0].mxu0 %v1189
        %v1268 = vpop.f32.mrb[0].mxu0
        %v1269 = vadd.f32 0.0, %v1268
        %v1270 = vpop.f32.mrb[0].mxu0
        %1271 = vmatprep.mubr.f32.mxu0 0.0
        %1272 = vmatmul.mubr.f32.gmra.mrb[0].mxu0 %v1192
        %v1273 = vpop.f32.mrb[0].mxu0
        %v1274 = vadd.f32 0.0, %v1273
        %v1275 = vpop.f32.mrb[0].mxu0
        %1276 = vmatprep.mubr.f32.mxu0 0.0
        %1277 = vmatmul.mubr.f32.gmra.mrb[0].mxu0 %v1195
        %v1278 = vpop.f32.mrb[0].mxu0
        %v1279 = vadd.f32 0.0, %v1278
        %v1280 = vpop.f32.mrb[0].mxu0
        %1281 = vdwg.mxu0
        %v1282 = vadd.f32 %v1159, %v1264
        %v1283 = vadd.f32 %v1164, %v1269
        %v1284 = vadd.f32 %v1169, %v1274
        %v1285 = vadd.f32 %v1174, %v1279
        %v1286 = vld [vmem:[%s10] sm:$0xff]
        %v1287 = vld [vmem:[%s10 + $0x8] sm:$0xff]
        %v1288 = vld [vmem:[%s10 + $0x10] sm:$0xff]
        %v1289 = vld [vmem:[%s10 + $0x18] sm:$0xff]
        %v1290 = vadd.f32 %v1282, %v1286
        %v1291 = vadd.f32 %v1283, %v1287
        %v1292 = vadd.f32 %v1284, %v1288
        %v1293 = vadd.f32 %v1285, %v1289
        %v1294 = vld [vmem:[#allocation10] sm:$0xff]
        %v1295 = vld [vmem:[#allocation10 + $0x8] sm:$0xff]
        %v1296 = vld [vmem:[#allocation10 + $0x10] sm:$0xff]
        %v1297 = vld [vmem:[#allocation10 + $0x18] sm:$0xff]
        %vm1298 = vcmask 261120
        %v1300 = vsel %vm1298, %v1294, 0
        %v1303 = vsel %vm1298, %v1295, 0
        %v1306 = vsel %vm1298, %v1296, 0
        %v1309 = vsel %vm1298, %v1297, 0
        %1311 = vmatprep.subr.mxu0 0.0
        %1312 = vmatpush1.msra.mxu0 %v1290
        %1313 = vmatprep.subr.mxu0 0.0
        %1314 = vmatpush1.msra.mxu0 %v1291
        %1315 = vmatprep.subr.mxu0 0.0
        %1316 = vmatpush1.msra.mxu0 %v1292
        %1317 = vmatprep.subr.mxu0 0.0
        %1318 = vmatpush1.msra.mxu0 %v1293
        %1319 = vmatprep.subr.mxu0 0.0
        %1320 = vmatpush1.msra.mxu0 0.0
        %1321 = vmatprep.subr.mxu0 0.0
        %1322 = vmatpush1.msra.mxu0 0.0
        %1323 = vmatprep.subr.mxu0 0.0
        %1324 = vmatpush1.msra.mxu0 0.0
        %1325 = vmatprep.subr.mxu0 0.0
        %1326 = vmatpush1.msra.mxu0 0.0
        %1327 = vmatprep.subr.mxu0 0.0
        %1328 = vmatpush1.msra.mxu0 0.0
        %1329 = vmatprep.subr.mxu0 0.0
        %1330 = vmatpush1.msra.mxu0 0.0
        %1331 = vmatprep.subr.mxu0 0.0
        %1332 = vmatpush1.msra.mxu0 0.0
        %1333 = vmatprep.subr.mxu0 0.0
        %1334 = vmatpush1.msra.mxu0 0.0
        %1335 = vmatprep.subr.mxu0 0.0
        %1336 = vmatpush1.msra.mxu0 0.0
        %1337 = vmatprep.subr.mxu0 0.0
        %1338 = vmatpush1.msra.mxu0 0.0
        %1339 = vmatprep.subr.mxu0 0.0
        %1340 = vmatpush1.msra.mxu0 0.0
        %1341 = vmatprep.subr.mxu0 0.0
        %1342 = vmatpush1.msra.mxu0 0.0
        %1343 = vmatprep.subr.mxu0 0.0
        %1344 = vmatpush1.msra.mxu0 0.0
        %1345 = vmatprep.subr.mxu0 0.0
        %1346 = vmatpush1.msra.mxu0 0.0
        %1347 = vmatprep.subr.mxu0 0.0
        %1348 = vmatpush1.msra.mxu0 0.0
        %1349 = vmatprep.subr.mxu0 0.0
        %1350 = vmatpush1.msra.mxu0 0.0
        %1351 = vmatprep.subr.mxu0 0.0
        %1352 = vmatpush1.msra.mxu0 0.0
        %1353 = vmatprep.subr.mxu0 0.0
        %1354 = vmatpush1.msra.mxu0 0.0
        %1355 = vmatprep.subr.mxu0 0.0
        %1356 = vmatpush1.msra.mxu0 0.0
        %1357 = vmatprep.subr.mxu0 0.0
        %1358 = vmatpush1.msra.mxu0 0.0
        %1359 = vmatprep.subr.mxu0 0.0
        %1360 = vmatpush1.msra.mxu0 0.0
        %1361 = vmatprep.subr.mxu0 0.0
        %1362 = vmatpush1.msra.mxu0 0.0
        %1363 = vmatprep.subr.mxu0 0.0
        %1364 = vmatpush1.msra.mxu0 0.0
        %1365 = vmatprep.subr.mxu0 0.0
        %1366 = vmatpush1.msra.mxu0 0.0
        %1367 = vmatprep.subr.mxu0 0.0
        %1368 = vmatpush1.msra.mxu0 0.0
        %1369 = vmatprep.subr.mxu0 0.0
        %1370 = vmatpush1.msra.mxu0 0.0
        %1371 = vmatprep.subr.mxu0 0.0
        %1372 = vmatpush1.msra.mxu0 0.0
        %1373 = vmatprep.subr.mxu0 0.0
        %1374 = vmatpush1.msra.mxu0 0.0
        %1375 = vmatprep.mubr.f32.mxu0 0.0
        %1376 = vmatmul.mubr.f32.gmra.mrb[0].mxu0 %v1300
        %v1377 = vpop.f32.mrb[0].mxu0
        %v1378 = vadd.f32 0.0, %v1377
        %v1379 = vpop.f32.mrb[0].mxu0
        %1380 = vmatprep.mubr.f32.mxu0 0.0
        %1381 = vmatmul.mubr.f32.gmra.mrb[0].mxu0 %v1303
        %v1382 = vpop.f32.mrb[0].mxu0
        %v1383 = vadd.f32 0.0, %v1382
        %v1384 = vpop.f32.mrb[0].mxu0
        %1385 = vmatprep.mubr.f32.mxu0 0.0
        %1386 = vmatmul.mubr.f32.gmra.mrb[0].mxu0 %v1306
        %v1387 = vpop.f32.mrb[0].mxu0
        %v1388 = vadd.f32 0.0, %v1387
        %v1389 = vpop.f32.mrb[0].mxu0
        %1390 = vmatprep.mubr.f32.mxu0 0.0
        %1391 = vmatmul.mubr.f32.gmra.mrb[0].mxu0 %v1309
        %v1392 = vpop.f32.mrb[0].mxu0
        %v1393 = vadd.f32 0.0, %v1392
        %v1394 = vpop.f32.mrb[0].mxu0
        %1395 = vdwg.mxu0
        %v1396 = vmul.f32 %v1290, %v1290
        %v1397 = vmul.f32 %v1291, %v1291
        %v1398 = vmul.f32 %v1292, %v1292
        %v1399 = vmul.f32 %v1293, %v1293
        %1400 = vmatprep.subr.mxu0 0.0
        %1401 = vmatpush1.msra.mxu0 %v1396
        %1402 = vmatprep.subr.mxu0 0.0
        %1403 = vmatpush1.msra.mxu0 %v1397
        %1404 = vmatprep.subr.mxu0 0.0
        %1405 = vmatpush1.msra.mxu0 %v1398
        %1406 = vmatprep.subr.mxu0 0.0
        %1407 = vmatpush1.msra.mxu0 %v1399
        %1408 = vmatprep.subr.mxu0 0.0
        %1409 = vmatpush1.msra.mxu0 0.0
        %1410 = vmatprep.subr.mxu0 0.0
        %1411 = vmatpush1.msra.mxu0 0.0
        %1412 = vmatprep.subr.mxu0 0.0
        %1413 = vmatpush1.msra.mxu0 0.0
        %1414 = vmatprep.subr.mxu0 0.0
        %1415 = vmatpush1.msra.mxu0 0.0
        %1416 = vmatprep.subr.mxu0 0.0
        %1417 = vmatpush1.msra.mxu0 0.0
        %1418 = vmatprep.subr.mxu0 0.0
        %1419 = vmatpush1.msra.mxu0 0.0
        %1420 = vmatprep.subr.mxu0 0.0
        %1421 = vmatpush1.msra.mxu0 0.0
        %1422 = vmatprep.subr.mxu0 0.0
        %1423 = vmatpush1.msra.mxu0 0.0
        %1424 = vmatprep.subr.mxu0 0.0
        %1425 = vmatpush1.msra.mxu0 0.0
        %1426 = vmatprep.subr.mxu0 0.0
        %1427 = vmatpush1.msra.mxu0 0.0
        %1428 = vmatprep.subr.mxu0 0.0
        %1429 = vmatpush1.msra.mxu0 0.0
        %1430 = vmatprep.subr.mxu0 0.0
        %1431 = vmatpush1.msra.mxu0 0.0
        %1432 = vmatprep.subr.mxu0 0.0
        %1433 = vmatpush1.msra.mxu0 0.0
        %1434 = vmatprep.subr.mxu0 0.0
        %1435 = vmatpush1.msra.mxu0 0.0
        %1436 = vmatprep.subr.mxu0 0.0
        %1437 = vmatpush1.msra.mxu0 0.0
        %1438 = vmatprep.subr.mxu0 0.0
        %1439 = vmatpush1.msra.mxu0 0.0
        %1440 = vmatprep.subr.mxu0 0.0
        %1441 = vmatpush1.msra.mxu0 0.0
        %1442 = vmatprep.subr.mxu0 0.0
        %1443 = vmatpush1.msra.mxu0 0.0
        %1444 = vmatprep.subr.mxu0 0.0
        %1445 = vmatpush1.msra.mxu0 0.0
        %1446 = vmatprep.subr.mxu0 0.0
        %1447 = vmatpush1.msra.mxu0 0.0
        %1448 = vmatprep.subr.mxu0 0.0
        %1449 = vmatpush1.msra.mxu0 0.0
        %1450 = vmatprep.subr.mxu0 0.0
        %1451 = vmatpush1.msra.mxu0 0.0
        %1452 = vmatprep.subr.mxu0 0.0
        %1453 = vmatpush1.msra.mxu0 0.0
        %1454 = vmatprep.subr.mxu0 0.0
        %1455 = vmatpush1.msra.mxu0 0.0
        %1456 = vmatprep.subr.mxu0 0.0
        %1457 = vmatpush1.msra.mxu0 0.0
        %1458 = vmatprep.subr.mxu0 0.0
        %1459 = vmatpush1.msra.mxu0 0.0
        %1460 = vmatprep.subr.mxu0 0.0
        %1461 = vmatpush1.msra.mxu0 0.0
        %1462 = vmatprep.subr.mxu0 0.0
        %1463 = vmatpush1.msra.mxu0 0.0
        %1464 = vmatprep.mubr.f32.mxu0 0.0
        %1465 = vmatmul.mubr.f32.gmra.mrb[0].mxu0 %v1300
        %v1466 = vpop.f32.mrb[0].mxu0
        %v1467 = vadd.f32 0.0, %v1466
        %v1468 = vpop.f32.mrb[0].mxu0
        %1469 = vmatprep.mubr.f32.mxu0 0.0
        %1470 = vmatmul.mubr.f32.gmra.mrb[0].mxu0 %v1303
        %v1471 = vpop.f32.mrb[0].mxu0
        %v1472 = vadd.f32 0.0, %v1471
        %v1473 = vpop.f32.mrb[0].mxu0
        %1474 = vmatprep.mubr.f32.mxu0 0.0
        %1475 = vmatmul.mubr.f32.gmra.mrb[0].mxu0 %v1306
        %v1476 = vpop.f32.mrb[0].mxu0
        %v1477 = vadd.f32 0.0, %v1476
        %v1478 = vpop.f32.mrb[0].mxu0
        %1479 = vmatprep.mubr.f32.mxu0 0.0
        %1480 = vmatmul.mubr.f32.gmra.mrb[0].mxu0 %v1309
        %v1481 = vpop.f32.mrb[0].mxu0
        %v1482 = vadd.f32 0.0, %v1481
        %v1483 = vpop.f32.mrb[0].mxu0
        %1484 = vdwg.mxu0
        %v1485 = vmul.f32 %v1378, %v1378
        %v1486 = vmul.f32 %v1383, %v1383
        %v1487 = vmul.f32 %v1388, %v1388
        %v1488 = vmul.f32 %v1393, %v1393
        %v1489 = vsub.f32 %v1467, %v1485
        %v1490 = vsub.f32 %v1472, %v1486
        %v1491 = vsub.f32 %v1477, %v1487
        %v1492 = vsub.f32 %v1482, %v1488
        %v1493 = vmax.f32 %v1489, 0.0
        %v1494 = vmax.f32 %v1490, 0.0
        %v1495 = vmax.f32 %v1491, 0.0
        %v1496 = vmax.f32 %v1492, 0.0
        %v1497 = vsub.f32 %v1290, %v1378
        %v1498 = vsub.f32 %v1291, %v1383
        %v1499 = vsub.f32 %v1292, %v1388
        %v1500 = vsub.f32 %v1293, %v1393
        %v1501 = vadd.f32 %v1493, 1e-05
        %v1502 = vadd.f32 %v1494, 1e-05
        %v1503 = vadd.f32 %v1495, 1e-05
        %v1504 = vadd.f32 %v1496, 1e-05
        %v1505 = vrsqrt.pop %v1501
        %v1506 = vrsqrt.pop %v1502
        %v1507 = vrsqrt.pop %v1503
        %v1508 = vrsqrt.pop %v1504
        %v1509 = vmul.f32 %v1497, %v1505
        %v1510 = vmul.f32 %v1498, %v1506
        %v1511 = vmul.f32 %v1499, %v1507
        %v1512 = vmul.f32 %v1500, %v1508
        %v1513 = vld [vmem:[#allocation7] sm:$0xff]
        %v1514 = vld [vmem:[#allocation7 + $0x8] sm:$0xff]
        %v1515 = vld [vmem:[#allocation7 + $0x10] sm:$0xff]
        %v1516 = vld [vmem:[#allocation7 + $0x18] sm:$0xff]
        %v1518 = vsel %vm1298, %v1513, 0
        %v1521 = vsel %vm1298, %v1514, 0
        %v1524 = vsel %vm1298, %v1515, 0
        %v1527 = vsel %vm1298, %v1516, 0
        %1529 = vmatprep.subr.mxu0 0.0
        %1530 = vmatpush1.msra.mxu0 %v1509
        %1531 = vmatprep.subr.mxu0 0.0
        %1532 = vmatpush1.msra.mxu0 %v1510
        %1533 = vmatprep.subr.mxu0 0.0
        %1534 = vmatpush1.msra.mxu0 %v1511
        %1535 = vmatprep.subr.mxu0 0.0
        %1536 = vmatpush1.msra.mxu0 %v1512
        %1537 = vmatprep.subr.mxu0 0.0
        %1538 = vmatpush1.msra.mxu0 0.0
        %1539 = vmatprep.subr.mxu0 0.0
        %1540 = vmatpush1.msra.mxu0 0.0
        %1541 = vmatprep.subr.mxu0 0.0
        %1542 = vmatpush1.msra.mxu0 0.0
        %1543 = vmatprep.subr.mxu0 0.0
        %1544 = vmatpush1.msra.mxu0 0.0
        %1545 = vmatprep.subr.mxu0 0.0
        %1546 = vmatpush1.msra.mxu0 0.0
        %1547 = vmatprep.subr.mxu0 0.0
        %1548 = vmatpush1.msra.mxu0 0.0
        %1549 = vmatprep.subr.mxu0 0.0
        %1550 = vmatpush1.msra.mxu0 0.0
        %1551 = vmatprep.subr.mxu0 0.0
        %1552 = vmatpush1.msra.mxu0 0.0
        %1553 = vmatprep.subr.mxu0 0.0
        %1554 = vmatpush1.msra.mxu0 0.0
        %1555 = vmatprep.subr.mxu0 0.0
        %1556 = vmatpush1.msra.mxu0 0.0
        %1557 = vmatprep.subr.mxu0 0.0
        %1558 = vmatpush1.msra.mxu0 0.0
        %1559 = vmatprep.subr.mxu0 0.0
        %1560 = vmatpush1.msra.mxu0 0.0
        %1561 = vmatprep.subr.mxu0 0.0
        %1562 = vmatpush1.msra.mxu0 0.0
        %1563 = vmatprep.subr.mxu0 0.0
        %1564 = vmatpush1.msra.mxu0 0.0
        %1565 = vmatprep.subr.mxu0 0.0
        %1566 = vmatpush1.msra.mxu0 0.0
        %1567 = vmatprep.subr.mxu0 0.0
        %1568 = vmatpush1.msra.mxu0 0.0
        %1569 = vmatprep.subr.mxu0 0.0
        %1570 = vmatpush1.msra.mxu0 0.0
        %1571 = vmatprep.subr.mxu0 0.0
        %1572 = vmatpush1.msra.mxu0 0.0
        %1573 = vmatprep.subr.mxu0 0.0
        %1574 = vmatpush1.msra.mxu0 0.0
        %1575 = vmatprep.subr.mxu0 0.0
        %1576 = vmatpush1.msra.mxu0 0.0
        %1577 = vmatprep.subr.mxu0 0.0
        %1578 = vmatpush1.msra.mxu0 0.0
        %1579 = vmatprep.subr.mxu0 0.0
        %1580 = vmatpush1.msra.mxu0 0.0
        %1581 = vmatprep.subr.mxu0 0.0
        %1582 = vmatpush1.msra.mxu0 0.0
        %1583 = vmatprep.subr.mxu0 0.0
        %1584 = vmatpush1.msra.mxu0 0.0
        %1585 = vmatprep.subr.mxu0 0.0
        %1586 = vmatpush1.msra.mxu0 0.0
        %1587 = vmatprep.subr.mxu0 0.0
        %1588 = vmatpush1.msra.mxu0 0.0
        %1589 = vmatprep.subr.mxu0 0.0
        %1590 = vmatpush1.msra.mxu0 0.0
        %1591 = vmatprep.subr.mxu0 0.0
        %1592 = vmatpush1.msra.mxu0 0.0
        %1593 = vmatprep.mubr.f32.mxu0 0.0
        %1594 = vmatmul.mubr.f32.gmra.mrb[0].mxu0 %v1518
        %v1595 = vpop.f32.mrb[0].mxu0
        %v1596 = vadd.f32 0.0, %v1595
        %v1597 = vpop.f32.mrb[0].mxu0
        %1598 = vmatprep.mubr.f32.mxu0 0.0
        %1599 = vmatmul.mubr.f32.gmra.mrb[0].mxu0 %v1521
        %v1600 = vpop.f32.mrb[0].mxu0
        %v1601 = vadd.f32 0.0, %v1600
        %v1602 = vpop.f32.mrb[0].mxu0
        %1603 = vmatprep.mubr.f32.mxu0 0.0
        %1604 = vmatmul.mubr.f32.gmra.mrb[0].mxu0 %v1524
        %v1605 = vpop.f32.mrb[0].mxu0
        %v1606 = vadd.f32 0.0, %v1605
        %v1607 = vpop.f32.mrb[0].mxu0
        %1608 = vmatprep.mubr.f32.mxu0 0.0
        %1609 = vmatmul.mubr.f32.gmra.mrb[0].mxu0 %v1527
        %v1610 = vpop.f32.mrb[0].mxu0
        %v1611 = vadd.f32 0.0, %v1610
        %v1612 = vpop.f32.mrb[0].mxu0
        %1613 = vdwg.mxu0
        %v1614 = vld [vmem:[#allocation9] sm:$0xff]
        %v1615 = vld [vmem:[#allocation9 + $0x8] sm:$0xff]
        %v1616 = vld [vmem:[#allocation9 + $0x10] sm:$0xff]
        %v1617 = vld [vmem:[#allocation9 + $0x18] sm:$0xff]
        %v1619 = vsel %vm1298, %v1614, 0
        %v1622 = vsel %vm1298, %v1615, 0
        %v1625 = vsel %vm1298, %v1616, 0
        %v1628 = vsel %vm1298, %v1617, 0
        %1630 = vmatprep.subr.mxu0 0.0
        %1631 = vmatpush1.msra.mxu0 %v1509
        %1632 = vmatprep.subr.mxu0 0.0
        %1633 = vmatpush1.msra.mxu0 %v1510
        %1634 = vmatprep.subr.mxu0 0.0
        %1635 = vmatpush1.msra.mxu0 %v1511
        %1636 = vmatprep.subr.mxu0 0.0
        %1637 = vmatpush1.msra.mxu0 %v1512
        %1638 = vmatprep.subr.mxu0 0.0
        %1639 = vmatpush1.msra.mxu0 0.0
        %1640 = vmatprep.subr.mxu0 0.0
        %1641 = vmatpush1.msra.mxu0 0.0
        %1642 = vmatprep.subr.mxu0 0.0
        %1643 = vmatpush1.msra.mxu0 0.0
        %1644 = vmatprep.subr.mxu0 0.0
        %1645 = vmatpush1.msra.mxu0 0.0
        %1646 = vmatprep.subr.mxu0 0.0
        %1647 = vmatpush1.msra.mxu0 0.0
        %1648 = vmatprep.subr.mxu0 0.0
        %1649 = vmatpush1.msra.mxu0 0.0
        %1650 = vmatprep.subr.mxu0 0.0
        %1651 = vmatpush1.msra.mxu0 0.0
        %1652 = vmatprep.subr.mxu0 0.0
        %1653 = vmatpush1.msra.mxu0 0.0
        %1654 = vmatprep.subr.mxu0 0.0
        %1655 = vmatpush1.msra.mxu0 0.0
        %1656 = vmatprep.subr.mxu0 0.0
        %1657 = vmatpush1.msra.mxu0 0.0
        %1658 = vmatprep.subr.mxu0 0.0
        %1659 = vmatpush1.msra.mxu0 0.0
        %1660 = vmatprep.subr.mxu0 0.0
        %1661 = vmatpush1.msra.mxu0 0.0
        %1662 = vmatprep.subr.mxu0 0.0
        %1663 = vmatpush1.msra.mxu0 0.0
        %1664 = vmatprep.subr.mxu0 0.0
        %1665 = vmatpush1.msra.mxu0 0.0
        %1666 = vmatprep.subr.mxu0 0.0
        %1667 = vmatpush1.msra.mxu0 0.0
        %1668 = vmatprep.subr.mxu0 0.0
        %1669 = vmatpush1.msra.mxu0 0.0
        %1670 = vmatprep.subr.mxu0 0.0
        %1671 = vmatpush1.msra.mxu0 0.0
        %1672 = vmatprep.subr.mxu0 0.0
        %1673 = vmatpush1.msra.mxu0 0.0
        %1674 = vmatprep.subr.mxu0 0.0
        %1675 = vmatpush1.msra.mxu0 0.0
        %1676 = vmatprep.subr.mxu0 0.0
        %1677 = vmatpush1.msra.mxu0 0.0
        %1678 = vmatprep.subr.mxu0 0.0
        %1679 = vmatpush1.msra.mxu0 0.0
        %1680 = vmatprep.subr.mxu0 0.0
        %1681 = vmatpush1.msra.mxu0 0.0
        %1682 = vmatprep.subr.mxu0 0.0
        %1683 = vmatpush1.msra.mxu0 0.0
        %1684 = vmatprep.subr.mxu0 0.0
        %1685 = vmatpush1.msra.mxu0 0.0
        %1686 = vmatprep.subr.mxu0 0.0
        %1687 = vmatpush1.msra.mxu0 0.0
        %1688 = vmatprep.subr.mxu0 0.0
        %1689 = vmatpush1.msra.mxu0 0.0
        %1690 = vmatprep.subr.mxu0 0.0
        %1691 = vmatpush1.msra.mxu0 0.0
        %1692 = vmatprep.subr.mxu0 0.0
        %1693 = vmatpush1.msra.mxu0 0.0
        %1694 = vmatprep.mubr.f32.mxu0 0.0
        %1695 = vmatmul.mubr.f32.gmra.mrb[0].mxu0 %v1619
        %v1696 = vpop.f32.mrb[0].mxu0
        %v1697 = vadd.f32 0.0, %v1696
        %v1698 = vpop.f32.mrb[0].mxu0
        %1699 = vmatprep.mubr.f32.mxu0 0.0
        %1700 = vmatmul.mubr.f32.gmra.mrb[0].mxu0 %v1622
        %v1701 = vpop.f32.mrb[0].mxu0
        %v1702 = vadd.f32 0.0, %v1701
        %v1703 = vpop.f32.mrb[0].mxu0
        %1704 = vmatprep.mubr.f32.mxu0 0.0
        %1705 = vmatmul.mubr.f32.gmra.mrb[0].mxu0 %v1625
        %v1706 = vpop.f32.mrb[0].mxu0
        %v1707 = vadd.f32 0.0, %v1706
        %v1708 = vpop.f32.mrb[0].mxu0
        %1709 = vmatprep.mubr.f32.mxu0 0.0
        %1710 = vmatmul.mubr.f32.gmra.mrb[0].mxu0 %v1628
        %v1711 = vpop.f32.mrb[0].mxu0
        %v1712 = vadd.f32 0.0, %v1711
        %v1713 = vpop.f32.mrb[0].mxu0
        %1714 = vdwg.mxu0
        %v1715 = vld [vmem:[%s11] sm:$0xff]
        %v1716 = vld [vmem:[%s11 + $0x8] sm:$0xff]
        %v1717 = vld [vmem:[%s11 + $0x10] sm:$0xff]
        %v1718 = vld [vmem:[%s11 + $0x18] sm:$0xff]
        %v1719 = vld [vmem:[%s11 + $0x20] sm:$0xff]
        %v1720 = vld [vmem:[%s11 + $0x28] sm:$0xff]
        %v1721 = vld [vmem:[%s11 + $0x30] sm:$0xff]
        %v1722 = vld [vmem:[%s11 + $0x38] sm:$0xff]
        %v1723 = vld [vmem:[%s11 + $0x40] sm:$0xff]
        %v1724 = vld [vmem:[%s11 + $0x48] sm:$0xff]
        %v1725 = vld [vmem:[%s11 + $0x50] sm:$0xff]
        %v1726 = vld [vmem:[%s11 + $0x58] sm:$0xff]
        %v1727 = vld [vmem:[%s11 + $0x60] sm:$0xff]
        %v1728 = vld [vmem:[%s11 + $0x68] sm:$0xff]
        %v1729 = vld [vmem:[%s11 + $0x70] sm:$0xff]
        %v1730 = vld [vmem:[%s11 + $0x78] sm:$0xff]
        %v1731 = vld [vmem:[%s12] sm:$0xff]
        %v1732 = vld [vmem:[%s12 + $0x8] sm:$0xff]
        %v1733 = vld [vmem:[%s12 + $0x10] sm:$0xff]
        %v1734 = vld [vmem:[%s12 + $0x18] sm:$0xff]
        %v1735 = vld [vmem:[%s12 + $0x20] sm:$0xff]
        %v1736 = vld [vmem:[%s12 + $0x28] sm:$0xff]
        %v1737 = vld [vmem:[%s12 + $0x30] sm:$0xff]
        %v1738 = vld [vmem:[%s12 + $0x38] sm:$0xff]
        %v1739 = vld [vmem:[%s12 + $0x40] sm:$0xff]
        %v1740 = vld [vmem:[%s12 + $0x48] sm:$0xff]
        %v1741 = vld [vmem:[%s12 + $0x50] sm:$0xff]
        %v1742 = vld [vmem:[%s12 + $0x58] sm:$0xff]
        %v1743 = vld [vmem:[%s12 + $0x60] sm:$0xff]
        %v1744 = vld [vmem:[%s12 + $0x68] sm:$0xff]
        %v1745 = vld [vmem:[%s12 + $0x70] sm:$0xff]
        %v1746 = vld [vmem:[%s12 + $0x78] sm:$0xff]
        %1747 = vmatprep.subr.mxu0 0.0
        %1748 = vmatpush1.msra.mxu0 %v1731
        %1749 = vmatprep.subr.mxu0 0.0
        %1750 = vmatpush1.msra.mxu0 %v1732
        %1751 = vmatprep.subr.mxu0 0.0
        %1752 = vmatpush1.msra.mxu0 %v1733
        %1753 = vmatprep.subr.mxu0 0.0
        %1754 = vmatpush1.msra.mxu0 %v1734
        %1755 = vmatprep.subr.mxu0 0.0
        %1756 = vmatpush1.msra.mxu0 %v1735
        %1757 = vmatprep.subr.mxu0 0.0
        %1758 = vmatpush1.msra.mxu0 %v1736
        %1759 = vmatprep.subr.mxu0 0.0
        %1760 = vmatpush1.msra.mxu0 %v1737
        %1761 = vmatprep.subr.mxu0 0.0
        %1762 = vmatpush1.msra.mxu0 %v1738
        %1763 = vmatprep.subr.mxu0 0.0
        %1764 = vmatpush1.msra.mxu0 %v1739
        %1765 = vmatprep.subr.mxu0 0.0
        %1766 = vmatpush1.msra.mxu0 %v1740
        %1767 = vmatprep.subr.mxu0 0.0
        %1768 = vmatpush1.msra.mxu0 %v1741
        %1769 = vmatprep.subr.mxu0 0.0
        %1770 = vmatpush1.msra.mxu0 %v1742
        %1771 = vmatprep.subr.mxu0 0.0
        %1772 = vmatpush1.msra.mxu0 %v1743
        %1773 = vmatprep.subr.mxu0 0.0
        %1774 = vmatpush1.msra.mxu0 %v1744
        %1775 = vmatprep.subr.mxu0 0.0
        %1776 = vmatpush1.msra.mxu0 %v1745
        %1777 = vmatprep.subr.mxu0 0.0
        %1778 = vmatpush1.msra.mxu0 %v1746
        %1779 = vmatprep.subr.mxu0 0.0
        %1780 = vmatpush1.msra.mxu0 0.0
        %1781 = vmatprep.subr.mxu0 0.0
        %1782 = vmatpush1.msra.mxu0 0.0
        %1783 = vmatprep.subr.mxu0 0.0
        %1784 = vmatpush1.msra.mxu0 0.0
        %1785 = vmatprep.subr.mxu0 0.0
        %1786 = vmatpush1.msra.mxu0 0.0
        %1787 = vmatprep.subr.mxu0 0.0
        %1788 = vmatpush1.msra.mxu0 0.0
        %1789 = vmatprep.subr.mxu0 0.0
        %1790 = vmatpush1.msra.mxu0 0.0
        %1791 = vmatprep.subr.mxu0 0.0
        %1792 = vmatpush1.msra.mxu0 0.0
        %1793 = vmatprep.subr.mxu0 0.0
        %1794 = vmatpush1.msra.mxu0 0.0
        %1795 = vmatprep.subr.mxu0 0.0
        %1796 = vmatpush1.msra.mxu0 0.0
        %1797 = vmatprep.subr.mxu0 0.0
        %1798 = vmatpush1.msra.mxu0 0.0
        %1799 = vmatprep.subr.mxu0 0.0
        %1800 = vmatpush1.msra.mxu0 0.0
        %1801 = vmatprep.subr.mxu0 0.0
        %1802 = vmatpush1.msra.mxu0 0.0
        %1803 = vmatprep.subr.mxu0 0.0
        %1804 = vmatpush1.msra.mxu0 0.0
        %1805 = vmatprep.subr.mxu0 0.0
        %1806 = vmatpush1.msra.mxu0 0.0
        %1807 = vmatprep.subr.mxu0 0.0
        %1808 = vmatpush1.msra.mxu0 0.0
        %1809 = vmatprep.subr.mxu0 0.0
        %1810 = vmatpush1.msra.mxu0 0.0
        %1811 = vmatprep.mubr.f32.mxu0 0.0
        %1812 = vmatmul.mubr.f32.gmra.mrb[0].mxu0 %v1596
        %v1813 = vpop.f32.mrb[0].mxu0
        %v1814 = vadd.f32 0.0, %v1813
        %v1815 = vpop.f32.mrb[0].mxu0
        %1816 = vmatprep.mubr.f32.mxu0 0.0
        %1817 = vmatmul.mubr.f32.gmra.mrb[0].mxu0 %v1601
        %v1818 = vpop.f32.mrb[0].mxu0
        %v1819 = vadd.f32 0.0, %v1818
        %v1820 = vpop.f32.mrb[0].mxu0
        %1821 = vmatprep.mubr.f32.mxu0 0.0
        %1822 = vmatmul.mubr.f32.gmra.mrb[0].mxu0 %v1606
        %v1823 = vpop.f32.mrb[0].mxu0
        %v1824 = vadd.f32 0.0, %v1823
        %v1825 = vpop.f32.mrb[0].mxu0
        %1826 = vmatprep.mubr.f32.mxu0 0.0
        %1827 = vmatmul.mubr.f32.gmra.mrb[0].mxu0 %v1611
        %v1828 = vpop.f32.mrb[0].mxu0
        %v1829 = vadd.f32 0.0, %v1828
        %v1830 = vpop.f32.mrb[0].mxu0
        %1831 = vdwg.mxu0
        %1832 = vmatprep.subr.mxu0 0.0
        %1833 = vmatpush1.msra.mxu0 %v1715
        %1834 = vmatprep.subr.mxu0 0.0
        %1835 = vmatpush1.msra.mxu0 %v1716
        %1836 = vmatprep.subr.mxu0 0.0
        %1837 = vmatpush1.msra.mxu0 %v1717
        %1838 = vmatprep.subr.mxu0 0.0
        %1839 = vmatpush1.msra.mxu0 %v1718
        %1840 = vmatprep.subr.mxu0 0.0
        %1841 = vmatpush1.msra.mxu0 %v1719
        %1842 = vmatprep.subr.mxu0 0.0
        %1843 = vmatpush1.msra.mxu0 %v1720
        %1844 = vmatprep.subr.mxu0 0.0
        %1845 = vmatpush1.msra.mxu0 %v1721
        %1846 = vmatprep.subr.mxu0 0.0
        %1847 = vmatpush1.msra.mxu0 %v1722
        %1848 = vmatprep.subr.mxu0 0.0
        %1849 = vmatpush1.msra.mxu0 %v1723
        %1850 = vmatprep.subr.mxu0 0.0
        %1851 = vmatpush1.msra.mxu0 %v1724
        %1852 = vmatprep.subr.mxu0 0.0
        %1853 = vmatpush1.msra.mxu0 %v1725
        %1854 = vmatprep.subr.mxu0 0.0
        %1855 = vmatpush1.msra.mxu0 %v1726
        %1856 = vmatprep.subr.mxu0 0.0
        %1857 = vmatpush1.msra.mxu0 %v1727
        %1858 = vmatprep.subr.mxu0 0.0
        %1859 = vmatpush1.msra.mxu0 %v1728
        %1860 = vmatprep.subr.mxu0 0.0
        %1861 = vmatpush1.msra.mxu0 %v1729
        %1862 = vmatprep.subr.mxu0 0.0
        %1863 = vmatpush1.msra.mxu0 %v1730
        %1864 = vmatprep.subr.mxu0 0.0
        %1865 = vmatpush1.msra.mxu0 0.0
        %1866 = vmatprep.subr.mxu0 0.0
        %1867 = vmatpush1.msra.mxu0 0.0
        %1868 = vmatprep.subr.mxu0 0.0
        %1869 = vmatpush1.msra.mxu0 0.0
        %1870 = vmatprep.subr.mxu0 0.0
        %1871 = vmatpush1.msra.mxu0 0.0
        %1872 = vmatprep.subr.mxu0 0.0
        %1873 = vmatpush1.msra.mxu0 0.0
        %1874 = vmatprep.subr.mxu0 0.0
        %1875 = vmatpush1.msra.mxu0 0.0
        %1876 = vmatprep.subr.mxu0 0.0
        %1877 = vmatpush1.msra.mxu0 0.0
        %1878 = vmatprep.subr.mxu0 0.0
        %1879 = vmatpush1.msra.mxu0 0.0
        %1880 = vmatprep.subr.mxu0 0.0
        %1881 = vmatpush1.msra.mxu0 0.0
        %1882 = vmatprep.subr.mxu0 0.0
        %1883 = vmatpush1.msra.mxu0 0.0
        %1884 = vmatprep.subr.mxu0 0.0
        %1885 = vmatpush1.msra.mxu0 0.0
        %1886 = vmatprep.subr.mxu0 0.0
        %1887 = vmatpush1.msra.mxu0 0.0
        %1888 = vmatprep.subr.mxu0 0.0
        %1889 = vmatpush1.msra.mxu0 0.0
        %1890 = vmatprep.subr.mxu0 0.0
        %1891 = vmatpush1.msra.mxu0 0.0
        %1892 = vmatprep.subr.mxu0 0.0
        %1893 = vmatpush1.msra.mxu0 0.0
        %1894 = vmatprep.subr.mxu0 0.0
        %1895 = vmatpush1.msra.mxu0 0.0
        %1896 = vmatprep.mubr.f32.mxu0 0.0
        %1897 = vmatmul.mubr.f32.gmra.mrb[0].mxu0 %v1509
        %v1898 = vpop.f32.mrb[0].mxu0
        %v1899 = vadd.f32 %v1814, %v1898
        %v1900 = vpop.f32.mrb[0].mxu0
        %1901 = vmatprep.mubr.f32.mxu0 0.0
        %1902 = vmatmul.mubr.f32.gmra.mrb[0].mxu0 %v1510
        %v1903 = vpop.f32.mrb[0].mxu0
        %v1904 = vadd.f32 %v1819, %v1903
        %v1905 = vpop.f32.mrb[0].mxu0
        %1906 = vmatprep.mubr.f32.mxu0 0.0
        %1907 = vmatmul.mubr.f32.gmra.mrb[0].mxu0 %v1511
        %v1908 = vpop.f32.mrb[0].mxu0
        %v1909 = vadd.f32 %v1824, %v1908
        %v1910 = vpop.f32.mrb[0].mxu0
        %1911 = vmatprep.mubr.f32.mxu0 0.0
        %1912 = vmatmul.mubr.f32.gmra.mrb[0].mxu0 %v1512
        %v1913 = vpop.f32.mrb[0].mxu0
        %v1914 = vadd.f32 %v1829, %v1913
        %v1915 = vpop.f32.mrb[0].mxu0
        %1916 = vdwg.mxu0
        %v1917 = vld [vmem:[#allocation16] sm:$0xff]
        %v1918 = vld [vmem:[#allocation16 + $0x8] sm:$0xff]
        %v1919 = vld [vmem:[#allocation16 + $0x10] sm:$0xff]
        %v1920 = vld [vmem:[#allocation16 + $0x18] sm:$0xff]
        %v1921 = vld [vmem:[#allocation16 + $0x20] sm:$0xff]
        %v1922 = vld [vmem:[#allocation16 + $0x28] sm:$0xff]
        %v1923 = vld [vmem:[#allocation16 + $0x30] sm:$0xff]
        %v1924 = vld [vmem:[#allocation16 + $0x38] sm:$0xff]
        %v1925 = vld [vmem:[#allocation16 + $0x40] sm:$0xff]
        %v1926 = vld [vmem:[#allocation16 + $0x48] sm:$0xff]
        %v1927 = vld [vmem:[#allocation16 + $0x50] sm:$0xff]
        %v1928 = vld [vmem:[#allocation16 + $0x58] sm:$0xff]
        %v1929 = vld [vmem:[#allocation16 + $0x60] sm:$0xff]
        %v1930 = vld [vmem:[#allocation16 + $0x68] sm:$0xff]
        %v1931 = vld [vmem:[#allocation16 + $0x70] sm:$0xff]
        %v1932 = vld [vmem:[#allocation16 + $0x78] sm:$0xff]
        %1933 = vmatprep.subr.mxu0 0.0
        %1934 = vmatpush1.msra.mxu0 %v1917
        %1935 = vmatprep.subr.mxu0 0.0
        %1936 = vmatpush1.msra.mxu0 %v1918
        %1937 = vmatprep.subr.mxu0 0.0
        %1938 = vmatpush1.msra.mxu0 %v1919
        %1939 = vmatprep.subr.mxu0 0.0
        %1940 = vmatpush1.msra.mxu0 %v1920
        %1941 = vmatprep.subr.mxu0 0.0
        %1942 = vmatpush1.msra.mxu0 %v1921
        %1943 = vmatprep.subr.mxu0 0.0
        %1944 = vmatpush1.msra.mxu0 %v1922
        %1945 = vmatprep.subr.mxu0 0.0
        %1946 = vmatpush1.msra.mxu0 %v1923
        %1947 = vmatprep.subr.mxu0 0.0
        %1948 = vmatpush1.msra.mxu0 %v1924
        %1949 = vmatprep.subr.mxu0 0.0
        %1950 = vmatpush1.msra.mxu0 %v1925
        %1951 = vmatprep.subr.mxu0 0.0
        %1952 = vmatpush1.msra.mxu0 %v1926
        %1953 = vmatprep.subr.mxu0 0.0
        %1954 = vmatpush1.msra.mxu0 %v1927
        %1955 = vmatprep.subr.mxu0 0.0
        %1956 = vmatpush1.msra.mxu0 %v1928
        %1957 = vmatprep.subr.mxu0 0.0
        %1958 = vmatpush1.msra.mxu0 %v1929
        %1959 = vmatprep.subr.mxu0 0.0
        %1960 = vmatpush1.msra.mxu0 %v1930
        %1961 = vmatprep.subr.mxu0 0.0
        %1962 = vmatpush1.msra.mxu0 %v1931
        %1963 = vmatprep.subr.mxu0 0.0
        %1964 = vmatpush1.msra.mxu0 %v1932
        %1965 = vmatprep.subr.mxu0 0.0
        %1966 = vmatpush1.msra.mxu0 0.0
        %1967 = vmatprep.subr.mxu0 0.0
        %1968 = vmatpush1.msra.mxu0 0.0
        %1969 = vmatprep.subr.mxu0 0.0
        %1970 = vmatpush1.msra.mxu0 0.0
        %1971 = vmatprep.subr.mxu0 0.0
        %1972 = vmatpush1.msra.mxu0 0.0
        %1973 = vmatprep.subr.mxu0 0.0
        %1974 = vmatpush1.msra.mxu0 0.0
        %1975 = vmatprep.subr.mxu0 0.0
        %1976 = vmatpush1.msra.mxu0 0.0
        %1977 = vmatprep.subr.mxu0 0.0
        %1978 = vmatpush1.msra.mxu0 0.0
        %1979 = vmatprep.subr.mxu0 0.0
        %1980 = vmatpush1.msra.mxu0 0.0
        %1981 = vmatprep.subr.mxu0 0.0
        %1982 = vmatpush1.msra.mxu0 0.0
        %1983 = vmatprep.subr.mxu0 0.0
        %1984 = vmatpush1.msra.mxu0 0.0
        %1985 = vmatprep.subr.mxu0 0.0
        %1986 = vmatpush1.msra.mxu0 0.0
        %1987 = vmatprep.subr.mxu0 0.0
        %1988 = vmatpush1.msra.mxu0 0.0
        %1989 = vmatprep.subr.mxu0 0.0
        %1990 = vmatpush1.msra.mxu0 0.0
        %1991 = vmatprep.subr.mxu0 0.0
        %1992 = vmatpush1.msra.mxu0 0.0
        %1993 = vmatprep.subr.mxu0 0.0
        %1994 = vmatpush1.msra.mxu0 0.0
        %1995 = vmatprep.subr.mxu0 0.0
        %1996 = vmatpush1.msra.mxu0 0.0
        %1997 = vmatprep.mubr.f32.mxu0 0.0
        %1998 = vmatmul.mubr.f32.gmra.mrb[0].mxu0 %v1697
        %v1999 = vpop.f32.mrb[0].mxu0
        %v2000 = vadd.f32 0.0, %v1999
        %v2001 = vpop.f32.mrb[0].mxu0
        %2002 = vmatprep.mubr.f32.mxu0 0.0
        %2003 = vmatmul.mubr.f32.gmra.mrb[0].mxu0 %v1702
        %v2004 = vpop.f32.mrb[0].mxu0
        %v2005 = vadd.f32 0.0, %v2004
        %v2006 = vpop.f32.mrb[0].mxu0
        %2007 = vmatprep.mubr.f32.mxu0 0.0
        %2008 = vmatmul.mubr.f32.gmra.mrb[0].mxu0 %v1707
        %v2009 = vpop.f32.mrb[0].mxu0
        %v2010 = vadd.f32 0.0, %v2009
        %v2011 = vpop.f32.mrb[0].mxu0
        %2012 = vmatprep.mubr.f32.mxu0 0.0
        %2013 = vmatmul.mubr.f32.gmra.mrb[0].mxu0 %v1712
        %v2014 = vpop.f32.mrb[0].mxu0
        %v2015 = vadd.f32 0.0, %v2014
        %v2016 = vpop.f32.mrb[0].mxu0
        %2017 = vdwg.mxu0
        %v2018 = vadd.f32 %v1899, %v2000
        %v2019 = vadd.f32 %v1904, %v2005
        %v2020 = vadd.f32 %v1909, %v2010
        %v2021 = vadd.f32 %v1914, %v2015
        %v2022 = vld [vmem:[#allocation18] sm:$0xff]
        %v2023 = vld [vmem:[#allocation18 + $0x8] sm:$0xff]
        %v2024 = vld [vmem:[#allocation18 + $0x10] sm:$0xff]
        %v2025 = vld [vmem:[#allocation18 + $0x18] sm:$0xff]
        %v2026 = vadd.f32 %v2018, %v2022
        %v2027 = vadd.f32 %v2019, %v2023
        %v2028 = vadd.f32 %v2020, %v2024
        %v2029 = vadd.f32 %v2021, %v2025
        %2030 = vst [vmem:[%s654] sm:$0xff] %v2026
        %2031 = vst [vmem:[%s654 + $0x8] sm:$0xff] %v2027
        %2032 = vst [vmem:[%s654 + $0x10] sm:$0xff] %v2028
        %2033 = vst [vmem:[%s654 + $0x18] sm:$0xff] %v2029
        %p2034 = scmp.lt.s32.totalorder %s32, 1
        %s2035 = scalar_select %p2034, %s32, 1
        %s2036 = smul.addr %s2035, 4
        %s2037 = smul.addr %s2036, 8
        %s2038 = scalar_lea.vmem %s15, %s2037
        // Predicated region
        $region125: #{run_conv_block4_mag.1} parent=79 // pred_check
          %p2039 = pneg %p370
        $region126: #{run_conv_block4_mag.1} parent=79 // pred_check_branch
          %2041 = sbr.rel (%p2039) target = $region128
        $region127: #{run_conv_block4_mag.1} parent=79 // pred_region
          _
        $region128: #{run_conv_block4_mag.1} parent=79 // pred_fallthru
          _
      $region80: #{run_conv_block4_mag.1} parent=5 // pred_fallthru
        _
      %p2042 = scmp.le.s32.totalorder 2, %s27
      // Predicated region
      $region129: #{run_conv_block4_mag.1} parent=5 // pred_check
        %p2043 = pneg %p2042
      $region130: #{run_conv_block4_mag.1} parent=5 // pred_check_branch
        %2045 = sbr.rel (%p2043) target = $region132
      $region131: #{run_conv_block4_mag.1} parent=5 // pred_region
        %s2046 = ssub.s32 %s27, 2
        // Predicated region
        $region133: #{run_conv_block4_mag.1} parent=131 // pred_check
          %p2047 = pneg %p376
        $region134: #{run_conv_block4_mag.1} parent=131 // pred_check_branch
          %2049 = sbr.rel (%p2047) target = $region136
        $region135: #{run_conv_block4_mag.1} parent=131 // pred_region
          %p2050 = scmp.lt.s32.totalorder %s33, 1
          %s2051 = scalar_select %p2050, %s33, 1
          %s2052 = smul.addr %s2051, 4
          %s2053 = smul.addr %s2052, 8
          %s2054 = scalar_lea.vmem %s15, %s2053
        $region136: #{run_conv_block4_mag.1} parent=131 // pred_fallthru
          _
      $region132: #{run_conv_block4_mag.1} parent=5 // pred_fallthru
        _
    $region6: #{run_conv_block4_mag.1} parent=1 // loop_footer
      %s31 = sadd.s32 1, %s27
    $region7: #{run_conv_block4_mag.1} parent=1 // loop_footer_branch
      %26 = sbr.rel target = $region3
    $region8: #{run_conv_block4_mag.1} parent=1 // loop_exit
      _
    %2055 = vsyncpa [#allocation3], 1
    %s2056 = scalar_lea.sflag [#allocation3], 1
    %2057 = vsyncpa %s2056, 1
    %2058 = vsyncpa [#allocation5], 1
    %2059 = vsyncpa [#allocation8], 1
    %2060 = vsyncpa [#allocation11], 1
    %2061 = vsyncpa [#allocation14], 1
    %2062 = vsyncpa [#allocation17], 1

</llo_original>
